<compile_context>
chip_gen: v6e
topology: v6e:2x2x1
jax: 0.10.0
libtpu: 0.0.40
codegen_flags: <defaults>
</compile_context>

<pallas_src>
import jax
import jax.numpy as jnp
from jax.experimental import pallas as pl
from jax.experimental.pallas import tpu as pltpu


# ----------------------------------------------------------------------------
# Fused backbone + masked-pool classifier kernel (one grid step per batch item)
# ----------------------------------------------------------------------------
def _fused_kernel(x_ref, mrow_ref, mcol_ref,
                  wt_stem_ref, bc_stem_ref,
                  wt_stage_ref, bc_stage_ref,
                  w_re_blk_ref, bc_re_ref,
                  w_cls_blk_ref, bc_cls_ref,
                  re_ref, logits_ref):
    f32 = jnp.float32
    x = x_ref[0]          # (Cin, N)   channels on sublanes, pixels on lanes
    mrow = mrow_ref[0]    # (1, N)
    mcol = mcol_ref[0]    # (N, 1)

    # stem: 1x1 conv + ReLU
    feat = jnp.maximum(
        jnp.dot(wt_stem_ref[...], x, preferred_element_type=f32)
        + bc_stem_ref[...], 0.0)                               # (Hh, N)

    n_stage = wt_stage_ref.shape[0]
    feats = [feat]
    cur = feat
    for i in range(n_stage):                                   # statically unrolled
        cur = jnp.maximum(
            jnp.dot(wt_stage_ref[i], cur, preferred_element_type=f32)
            + bc_stage_ref[i], 0.0)                            # (Hh, N)
        feats.append(cur)

    # All 4 sigmoid attention heads as ONE block-diagonal matmul; mask gate
    # applied in-kernel; lane-dense (n_stage, N) store.
    fs_stages = jnp.concatenate(feats[1:], axis=0)             # (n_stage*Hh, N)
    re = jax.nn.sigmoid(
        jnp.dot(w_re_blk_ref[...], fs_stages, preferred_element_type=f32)
        + bc_re_ref[...]) * mrow                               # (n_stage, N)
    re_ref[0] = re.astype(re_ref.dtype)

    # Mask-weighted global average pooling over all 5 scales with one MXU matvec.
    fa = jnp.concatenate([feats[0], fs_stages], axis=0)        # (5*Hh, N)
    msum = jnp.sum(mrow, axis=1, keepdims=True)                # (1, 1)
    inv = pl.reciprocal(msum + 1e-6, approx=True)              # EUP slot, ~free
    pooled = jnp.dot(fa, mcol, preferred_element_type=f32) * inv   # (5*Hh, 1)

    # Per-scale shared linear head as one block-diagonal matmul.
    logits = jnp.dot(w_cls_blk_ref[...], pooled,
                     preferred_element_type=f32) + bc_cls_ref[...]  # (5*K, 1)
    logits_ref[0] = logits.astype(logits_ref.dtype)


def fused_forward(x3, mrow, mcol, wt_stem, bc_stem, wt_stage, bc_stage,
                  w_re_blk, bc_re, w_cls_blk, bc_cls):
    """x3: (B, Cin, N); mrow: (B, 1, N); mcol: (B, N, 1)."""
    B, Cin, N = x3.shape
    S = wt_stage.shape[0]          # number of stages (4)
    KC = bc_cls.shape[0]           # 5 * num_classes

    def const_spec(arr):
        nd = arr.ndim
        return pl.BlockSpec(arr.shape, lambda b, _nd=nd: (0,) * _nd)

    return pl.pallas_call(
        _fused_kernel,
        out_shape=(
            jax.ShapeDtypeStruct((B, S, N), jnp.float32),      # re maps, lane-dense
            jax.ShapeDtypeStruct((B, KC, 1), jnp.float32),     # per-scale logits
        ),
        grid_spec=pltpu.PrefetchScalarGridSpec(
            num_scalar_prefetch=0,
            grid=(B,),
            in_specs=[
                pl.BlockSpec((1, Cin, N), lambda b: (b, 0, 0)),
                pl.BlockSpec((1, 1, N), lambda b: (b, 0, 0)),
                pl.BlockSpec((1, N, 1), lambda b: (b, 0, 0)),
                const_spec(wt_stem),
                const_spec(bc_stem),
                const_spec(wt_stage),
                const_spec(bc_stage),
                const_spec(w_re_blk),
                const_spec(bc_re),
                const_spec(w_cls_blk),
                const_spec(bc_cls),
            ],
            out_specs=[
                pl.BlockSpec((1, S, N), lambda b: (b, 0, 0)),
                pl.BlockSpec((1, KC, 1), lambda b: (b, 0, 0)),
            ],
        ),
        compiler_params=pltpu.CompilerParams(
            dimension_semantics=("parallel",)),
    )(x3, mrow, mcol, wt_stem, bc_stem, wt_stage, bc_stage,
      w_re_blk, bc_re, w_cls_blk, bc_cls)


# ----------------------------------------------------------------------------
# Parameter container / wrapper (synthetic backbone + classifier weights)
# ----------------------------------------------------------------------------
def _block_diag(blocks):
    rows = sum(b.shape[0] for b in blocks)
    cols = sum(b.shape[1] for b in blocks)
    out = jnp.zeros((rows, cols), blocks[0].dtype)
    r = c = 0
    for b in blocks:
        out = out.at[r:r + b.shape[0], c:c + b.shape[1]].set(b)
        r += b.shape[0]
        c += b.shape[1]
    return out


class FeatClassifierPallas:
    def __init__(self, key, c_in=4, hidden=32, num_classes=8):
        self.c_in = c_in
        self.hidden = hidden
        self.num_classes = num_classes
        keys = jax.random.split(key, 16)
        s = 0.1
        # same synthetic parameterization as before (pixel-rows convention)...
        w_stem = jax.random.normal(keys[0], (c_in, hidden), jnp.float32) * s
        b_stem = jnp.zeros((1, hidden), jnp.float32)
        w_stage = [jax.random.normal(keys[1 + i], (hidden, hidden), jnp.float32) * s
                   for i in range(4)]
        b_stage = [jnp.zeros((1, hidden), jnp.float32) for _ in range(4)]
        w_re = [jax.random.normal(keys[5 + i], (hidden, 1), jnp.float32) * s
                for i in range(4)]
        b_re = [jnp.zeros((1, 1), jnp.float32) for _ in range(4)]
        w_cls = jax.random.normal(keys[9], (hidden, num_classes), jnp.float32) * s
        b_cls = jnp.zeros((1, num_classes), jnp.float32)

        # ...converted once to the channels-first kernel layout.
        self.wt_stem = w_stem.T                                     # (hidden, c_in)
        self.bc_stem = b_stem.reshape(hidden, 1)
        self.wt_stage = jnp.stack([w.T for w in w_stage])           # (4, hidden, hidden)
        self.bc_stage = jnp.stack([b.reshape(hidden, 1) for b in b_stage])
        self.w_re_blk = _block_diag([w.T for w in w_re])            # (4, 4*hidden)
        self.bc_re = jnp.concatenate(b_re, axis=0).reshape(4, 1)    # (4, 1)
        self.w_cls_blk = _block_diag([w_cls.T] * 5)                 # (5*K, 5*hidden)
        self.bc_cls = jnp.tile(b_cls.reshape(num_classes, 1), (5, 1))   # (5*K, 1)

    def __call__(self, x, img_mask, label=None):
        # x: NCHW (B, Cin, H, W), img_mask: NCHW (B, 1, H, W)
        B, C, H, W = x.shape
        N = H * W
        # Free reshapes only -- no NCHW->NHWC transpose anywhere.
        x3 = x.reshape(B, C, N)
        mrow = img_mask.reshape(B, 1, N)
        mcol = img_mask.reshape(B, N, 1)

        re_out, logits_flat = fused_forward(
            x3, mrow, mcol,
            self.wt_stem, self.bc_stem,
            self.wt_stage, self.bc_stage,
            self.w_re_blk, self.bc_re,
            self.w_cls_blk, self.bc_cls)

        # Attention maps: lane-dense (B, 4, N) slab -> NCHW per-scale maps.
        re_maps = re_out.reshape(B, 4, H, W)
        re_2, re_3, re_4, re_5 = (re_maps[:, i:i + 1] for i in range(4))

        # Classifier glue (tiny): per-scale logits -> mean + consistency loss.
        stacked = jnp.transpose(
            logits_flat.reshape(B, 5, self.num_classes), (1, 0, 2))  # (5, B, K)
        logits_1 = jnp.mean(stacked, axis=0)                         # (B, K)
        loss = jnp.mean((stacked - logits_1[None]) ** 2)
        if label is not None:
            bce = jnp.mean(
                jnp.maximum(logits_1, 0.0) - logits_1 * label
                + jnp.log1p(jnp.exp(-jnp.abs(logits_1))))
            loss = loss + bce
        return logits_1, re_2, re_3, re_4, re_5, loss


# ----------------------------------------------------------------------------
if __name__ == "__main__":
    key = jax.random.PRNGKey(0)
    k_x, k_m, k_p = jax.random.split(key, 3)

    B, C, H, W = 2, 4, 16, 16
    x = jax.random.normal(k_x, (B, C, H, W), jnp.float32)
    img_mask = (jax.random.uniform(k_m, (B, 1, H, W)) > 0.3).astype(jnp.float32)

    model = FeatClassifierPallas(k_p, c_in=C, hidden=32, num_classes=8)
    logits_1, re_2, re_3, re_4, re_5, loss = model(x, img_mask, label=None)

    jax.block_until_ready((logits_1, re_2, re_3, re_4, re_5, loss))
    assert logits_1.shape == (B, 8)
    assert re_2.shape == (B, 1, H, W) and re_5.shape == (B, 1, H, W)
    assert loss.shape == ()
    print("KERNEL_OK")
</pallas_src>

<mosaic_0001>
module attributes {stable_mosaic.version = 11 : i64} {
  func.func @_fused_kernel(%arg0: i32, %arg1: memref<1x4x256xf32, #tpu.memory_space<vmem>>, %arg2: memref<1x1x256xf32, #tpu.memory_space<vmem>>, %arg3: memref<1x256x1xf32, #tpu.memory_space<vmem>>, %arg4: memref<32x4xf32, #tpu.memory_space<vmem>>, %arg5: memref<32x1xf32, #tpu.memory_space<vmem>>, %arg6: memref<4x32x32xf32, #tpu.memory_space<vmem>>, %arg7: memref<4x32x1xf32, #tpu.memory_space<vmem>>, %arg8: memref<4x128xf32, #tpu.memory_space<vmem>>, %arg9: memref<4x1xf32, #tpu.memory_space<vmem>>, %arg10: memref<40x160xf32, #tpu.memory_space<vmem>>, %arg11: memref<40x1xf32, #tpu.memory_space<vmem>>, %arg12: memref<1x4x256xf32, #tpu.memory_space<vmem>>, %arg13: memref<1x40x1xf32, #tpu.memory_space<vmem>>) attributes {dimension_semantics = [#tpu.dimension_semantics<parallel>], iteration_bounds = array<i64: 2>, scalar_prefetch = 0 : i64, scratch_operands = 0 : i64, tpu.core_type = #tpu.core_type<tc>, window_params = [{transform_indices = @transform_0, window_bounds = array<i64: 1, 4, 256>}, {transform_indices = @transform_1, window_bounds = array<i64: 1, 1, 256>}, {transform_indices = @transform_2, window_bounds = array<i64: 1, 256, 1>}, {pipeline_mode = #tpu.pipeline_mode<synchronous>, transform_indices = @transform_3, window_bounds = array<i64: 32, 4>}, {pipeline_mode = #tpu.pipeline_mode<synchronous>, transform_indices = @transform_4, window_bounds = array<i64: 32, 1>}, {pipeline_mode = #tpu.pipeline_mode<synchronous>, transform_indices = @transform_5, window_bounds = array<i64: 4, 32, 32>}, {pipeline_mode = #tpu.pipeline_mode<synchronous>, transform_indices = @transform_6, window_bounds = array<i64: 4, 32, 1>}, {pipeline_mode = #tpu.pipeline_mode<synchronous>, transform_indices = @transform_7, window_bounds = array<i64: 4, 128>}, {pipeline_mode = #tpu.pipeline_mode<synchronous>, transform_indices = @transform_8, window_bounds = array<i64: 4, 1>}, {pipeline_mode = #tpu.pipeline_mode<synchronous>, transform_indices = @transform_9, window_bounds = array<i64: 40, 160>}, {pipeline_mode = #tpu.pipeline_mode<synchronous>, transform_indices = @transform_10, window_bounds = array<i64: 40, 1>}, {transform_indices = @transform_11, window_bounds = array<i64: 1, 4, 256>}, {transform_indices = @transform_12, window_bounds = array<i64: 1, 40, 1>}]} {
    %c0 = arith.constant 0 : index
    %c0_0 = arith.constant 0 : index
    %c0_1 = arith.constant 0 : index
    %0 = vector.load %arg1[%c0, %c0_0, %c0_1] : memref<1x4x256xf32, #tpu.memory_space<vmem>>, vector<1x4x256xf32>
    %1 = vector.shape_cast %0 : vector<1x4x256xf32> to vector<4x256xf32>
    %c0_2 = arith.constant 0 : index
    %c0_3 = arith.constant 0 : index
    %c0_4 = arith.constant 0 : index
    %2 = vector.load %arg2[%c0_2, %c0_3, %c0_4] : memref<1x1x256xf32, #tpu.memory_space<vmem>>, vector<1x1x256xf32>
    %3 = vector.shape_cast %2 : vector<1x1x256xf32> to vector<1x256xf32>
    %c0_5 = arith.constant 0 : index
    %c0_6 = arith.constant 0 : index
    %c0_7 = arith.constant 0 : index
    %4 = vector.load %arg3[%c0_5, %c0_6, %c0_7] : memref<1x256x1xf32, #tpu.memory_space<vmem>>, vector<1x256x1xf32>
    %5 = vector.shape_cast %4 : vector<1x256x1xf32> to vector<256x1xf32>
    %c0_8 = arith.constant 0 : index
    %c0_9 = arith.constant 0 : index
    %6 = vector.load %arg4[%c0_8, %c0_9] : memref<32x4xf32, #tpu.memory_space<vmem>>, vector<32x4xf32>
    %cst = arith.constant dense<0.000000e+00> : vector<32x256xf32>
    %7 = tpu.matmul %6, %1, %cst {dimension_numbers = #tpu.dot_dimension_numbers<[1], [0], [0], [1], [0, 0, 1, 1], [], []>} : vector<32x4xf32>, vector<4x256xf32>, vector<32x256xf32> -> vector<32x256xf32>
    %c0_10 = arith.constant 0 : index
    %c0_11 = arith.constant 0 : index
    %8 = vector.load %arg5[%c0_10, %c0_11] : memref<32x1xf32, #tpu.memory_space<vmem>>, vector<32x1xf32>
    %9 = vector.broadcast %8 : vector<32x1xf32> to vector<32x256xf32>
    %10 = arith.addf %7, %9 : vector<32x256xf32>
    %cst_12 = arith.constant 0.000000e+00 : f32
    %11 = vector.broadcast %cst_12 : f32 to vector<32x256xf32>
    %12 = arith.maximumf %10, %11 : vector<32x256xf32>
    %c0_13 = arith.constant 0 : index
    %c0_14 = arith.constant 0 : index
    %c0_15 = arith.constant 0 : index
    %13 = vector.load %arg6[%c0_13, %c0_14, %c0_15] : memref<4x32x32xf32, #tpu.memory_space<vmem>>, vector<1x32x32xf32>
    %14 = vector.shape_cast %13 : vector<1x32x32xf32> to vector<32x32xf32>
    %cst_16 = arith.constant dense<0.000000e+00> : vector<32x256xf32>
    %15 = tpu.matmul %14, %12, %cst_16 {dimension_numbers = #tpu.dot_dimension_numbers<[1], [0], [0], [1], [0, 0, 1, 1], [], []>} : vector<32x32xf32>, vector<32x256xf32>, vector<32x256xf32> -> vector<32x256xf32>
    %c0_17 = arith.constant 0 : index
    %c0_18 = arith.constant 0 : index
    %c0_19 = arith.constant 0 : index
    %16 = vector.load %arg7[%c0_17, %c0_18, %c0_19] : memref<4x32x1xf32, #tpu.memory_space<vmem>>, vector<1x32x1xf32>
    %17 = vector.shape_cast %16 : vector<1x32x1xf32> to vector<32x1xf32>
    %18 = vector.broadcast %17 : vector<32x1xf32> to vector<32x256xf32>
    %19 = arith.addf %15, %18 : vector<32x256xf32>
    %cst_20 = arith.constant 0.000000e+00 : f32
    %20 = vector.broadcast %cst_20 : f32 to vector<32x256xf32>
    %21 = arith.maximumf %19, %20 : vector<32x256xf32>
    %c1 = arith.constant 1 : index
    %c0_21 = arith.constant 0 : index
    %c0_22 = arith.constant 0 : index
    %22 = vector.load %arg6[%c1, %c0_21, %c0_22] : memref<4x32x32xf32, #tpu.memory_space<vmem>>, vector<1x32x32xf32>
    %23 = vector.shape_cast %22 : vector<1x32x32xf32> to vector<32x32xf32>
    %cst_23 = arith.constant dense<0.000000e+00> : vector<32x256xf32>
    %24 = tpu.matmul %23, %21, %cst_23 {dimension_numbers = #tpu.dot_dimension_numbers<[1], [0], [0], [1], [0, 0, 1, 1], [], []>} : vector<32x32xf32>, vector<32x256xf32>, vector<32x256xf32> -> vector<32x256xf32>
    %c1_24 = arith.constant 1 : index
    %c0_25 = arith.constant 0 : index
    %c0_26 = arith.constant 0 : index
    %25 = vector.load %arg7[%c1_24, %c0_25, %c0_26] : memref<4x32x1xf32, #tpu.memory_space<vmem>>, vector<1x32x1xf32>
    %26 = vector.shape_cast %25 : vector<1x32x1xf32> to vector<32x1xf32>
    %27 = vector.broadcast %26 : vector<32x1xf32> to vector<32x256xf32>
    %28 = arith.addf %24, %27 : vector<32x256xf32>
    %cst_27 = arith.constant 0.000000e+00 : f32
    %29 = vector.broadcast %cst_27 : f32 to vector<32x256xf32>
    %30 = arith.maximumf %28, %29 : vector<32x256xf32>
    %c2 = arith.constant 2 : index
    %c0_28 = arith.constant 0 : index
    %c0_29 = arith.constant 0 : index
    %31 = vector.load %arg6[%c2, %c0_28, %c0_29] : memref<4x32x32xf32, #tpu.memory_space<vmem>>, vector<1x32x32xf32>
    %32 = vector.shape_cast %31 : vector<1x32x32xf32> to vector<32x32xf32>
    %cst_30 = arith.constant dense<0.000000e+00> : vector<32x256xf32>
    %33 = tpu.matmul %32, %30, %cst_30 {dimension_numbers = #tpu.dot_dimension_numbers<[1], [0], [0], [1], [0, 0, 1, 1], [], []>} : vector<32x32xf32>, vector<32x256xf32>, vector<32x256xf32> -> vector<32x256xf32>
    %c2_31 = arith.constant 2 : index
    %c0_32 = arith.constant 0 : index
    %c0_33 = arith.constant 0 : index
    %34 = vector.load %arg7[%c2_31, %c0_32, %c0_33] : memref<4x32x1xf32, #tpu.memory_space<vmem>>, vector<1x32x1xf32>
    %35 = vector.shape_cast %34 : vector<1x32x1xf32> to vector<32x1xf32>
    %36 = vector.broadcast %35 : vector<32x1xf32> to vector<32x256xf32>
    %37 = arith.addf %33, %36 : vector<32x256xf32>
    %cst_34 = arith.constant 0.000000e+00 : f32
    %38 = vector.broadcast %cst_34 : f32 to vector<32x256xf32>
    %39 = arith.maximumf %37, %38 : vector<32x256xf32>
    %c3 = arith.constant 3 : index
    %c0_35 = arith.constant 0 : index
    %c0_36 = arith.constant 0 : index
    %40 = vector.load %arg6[%c3, %c0_35, %c0_36] : memref<4x32x32xf32, #tpu.memory_space<vmem>>, vector<1x32x32xf32>
    %41 = vector.shape_cast %40 : vector<1x32x32xf32> to vector<32x32xf32>
    %cst_37 = arith.constant dense<0.000000e+00> : vector<32x256xf32>
    %42 = tpu.matmul %41, %39, %cst_37 {dimension_numbers = #tpu.dot_dimension_numbers<[1], [0], [0], [1], [0, 0, 1, 1], [], []>} : vector<32x32xf32>, vector<32x256xf32>, vector<32x256xf32> -> vector<32x256xf32>
    %c3_38 = arith.constant 3 : index
    %c0_39 = arith.constant 0 : index
    %c0_40 = arith.constant 0 : index
    %43 = vector.load %arg7[%c3_38, %c0_39, %c0_40] : memref<4x32x1xf32, #tpu.memory_space<vmem>>, vector<1x32x1xf32>
    %44 = vector.shape_cast %43 : vector<1x32x1xf32> to vector<32x1xf32>
    %45 = vector.broadcast %44 : vector<32x1xf32> to vector<32x256xf32>
    %46 = arith.addf %42, %45 : vector<32x256xf32>
    %cst_41 = arith.constant 0.000000e+00 : f32
    %47 = vector.broadcast %cst_41 : f32 to vector<32x256xf32>
    %48 = arith.maximumf %46, %47 : vector<32x256xf32>
    %49 = tpu.concatenate %21, %30, %39, %48 in 0 : vector<32x256xf32>, vector<32x256xf32>, vector<32x256xf32>, vector<32x256xf32> -> vector<128x256xf32>
    %c0_42 = arith.constant 0 : index
    %c0_43 = arith.constant 0 : index
    %50 = vector.load %arg8[%c0_42, %c0_43] : memref<4x128xf32, #tpu.memory_space<vmem>>, vector<4x128xf32>
    %cst_44 = arith.constant dense<0.000000e+00> : vector<4x256xf32>
    %51 = tpu.matmul %50, %49, %cst_44 {dimension_numbers = #tpu.dot_dimension_numbers<[1], [0], [0], [1], [0, 0, 1, 1], [], []>} : vector<4x128xf32>, vector<128x256xf32>, vector<4x256xf32> -> vector<4x256xf32>
    %c0_45 = arith.constant 0 : index
    %c0_46 = arith.constant 0 : index
    %52 = vector.load %arg9[%c0_45, %c0_46] : memref<4x1xf32, #tpu.memory_space<vmem>>, vector<4x1xf32>
    %53 = vector.broadcast %52 : vector<4x1xf32> to vector<4x256xf32>
    %54 = arith.addf %51, %53 : vector<4x256xf32>
    %55 = arith.negf %54 : vector<4x256xf32>
    %56 = math.exp %55 : vector<4x256xf32>
    %cst_47 = arith.constant 1.000000e+00 : f32
    %57 = vector.broadcast %cst_47 : f32 to vector<4x256xf32>
    %58 = arith.addf %57, %56 : vector<4x256xf32>
    %59 = arith.divf %57, %58 : vector<4x256xf32>
    %60 = vector.broadcast %3 : vector<1x256xf32> to vector<4x256xf32>
    %61 = arith.mulf %59, %60 : vector<4x256xf32>
    %c0_48 = arith.constant 0 : index
    %c0_49 = arith.constant 0 : index
    %c0_50 = arith.constant 0 : index
    %62 = vector.load %arg12[%c0_48, %c0_49, %c0_50] : memref<1x4x256xf32, #tpu.memory_space<vmem>>, vector<1x4x256xf32>
    %63 = vector.shape_cast %62 : vector<1x4x256xf32> to vector<4x256xf32>
    %64 = vector.shape_cast %61 : vector<4x256xf32> to vector<1x4x256xf32>
    tpu.vector_store %arg12[%c0_48, %c0_49, %c0_50], %64 {strides = array<i32>} : memref<1x4x256xf32, #tpu.memory_space<vmem>>, vector<1x4x256xf32>,
    %65 = tpu.concatenate %12, %49 in 0 : vector<32x256xf32>, vector<128x256xf32> -> vector<160x256xf32>
    %cst_51 = arith.constant dense<0.000000e+00> : vector<1xf32>
    %66 = vector.multi_reduction <add>, %3, %cst_51 [1] : vector<1x256xf32> to vector<1xf32>
    %67 = vector.shape_cast %66 : vector<1xf32> to vector<1x1xf32>
    %cst_52 = arith.constant 9.99999997E-7 : f32
    %68 = vector.broadcast %cst_52 : f32 to vector<1x1xf32>
    %69 = arith.addf %67, %68 : vector<1x1xf32>
    %70 = tpu.reciprocal %69 {approx = true} : vector<1x1xf32> -> vector<1x1xf32>
    %cst_53 = arith.constant dense<0.000000e+00> : vector<160x1xf32>
    %71 = tpu.matmul %65, %5, %cst_53 {dimension_numbers = #tpu.dot_dimension_numbers<[1], [0], [0], [1], [0, 0, 1, 1], [], []>} : vector<160x256xf32>, vector<256x1xf32>, vector<160x1xf32> -> vector<160x1xf32>
    %72 = vector.broadcast %70 : vector<1x1xf32> to vector<160x1xf32>
    %73 = arith.mulf %71, %72 : vector<160x1xf32>
    %c0_54 = arith.constant 0 : index
    %c0_55 = arith.constant 0 : index
    %74 = vector.load %arg10[%c0_54, %c0_55] : memref<40x160xf32, #tpu.memory_space<vmem>>, vector<40x160xf32>
    %cst_56 = arith.constant dense<0.000000e+00> : vector<40x1xf32>
    %75 = tpu.matmul %74, %73, %cst_56 {dimension_numbers = #tpu.dot_dimension_numbers<[1], [0], [0], [1], [0, 0, 1, 1], [], []>} : vector<40x160xf32>, vector<160x1xf32>, vector<40x1xf32> -> vector<40x1xf32>
    %c0_57 = arith.constant 0 : index
    %c0_58 = arith.constant 0 : index
    %76 = vector.load %arg11[%c0_57, %c0_58] : memref<40x1xf32, #tpu.memory_space<vmem>>, vector<40x1xf32>
    %77 = arith.addf %75, %76 : vector<40x1xf32>
    %c0_59 = arith.constant 0 : index
    %c0_60 = arith.constant 0 : index
    %c0_61 = arith.constant 0 : index
    %78 = vector.load %arg13[%c0_59, %c0_60, %c0_61] : memref<1x40x1xf32, #tpu.memory_space<vmem>>, vector<1x40x1xf32>
    %79 = vector.shape_cast %78 : vector<1x40x1xf32> to vector<40x1xf32>
    %80 = vector.shape_cast %77 : vector<40x1xf32> to vector<1x40x1xf32>
    tpu.vector_store %arg13[%c0_59, %c0_60, %c0_61], %80 {strides = array<i32>} : memref<1x40x1xf32, #tpu.memory_space<vmem>>, vector<1x40x1xf32>,
    return
  }
  func.func @transform_0(%arg0: i32) -> (i32, i32, i32) {
    %c0_i32 = arith.constant 0 : i32
    %c0_i32_0 = arith.constant 0 : i32
    %c0_i32_1 = arith.constant 0 : i32
    return %arg0, %c0_i32, %c0_i32_0 : i32, i32, i32
  }
  func.func @transform_1(%arg0: i32) -> (i32, i32, i32) {
    %c0_i32 = arith.constant 0 : i32
    %c0_i32_0 = arith.constant 0 : i32
    %c0_i32_1 = arith.constant 0 : i32
    return %arg0, %c0_i32, %c0_i32_0 : i32, i32, i32
  }
  func.func @transform_2(%arg0: i32) -> (i32, i32, i32) {
    %c0_i32 = arith.constant 0 : i32
    %c0_i32_0 = arith.constant 0 : i32
    %c0_i32_1 = arith.constant 0 : i32
    return %arg0, %c0_i32, %c0_i32_0 : i32, i32, i32
  }
  func.func @transform_3(%arg0: i32) -> (i32, i32) {
    %c0_i32 = arith.constant 0 : i32
    %c0_i32_0 = arith.constant 0 : i32
    %c0_i32_1 = arith.constant 0 : i32
    return %c0_i32, %c0_i32_0 : i32, i32
  }
  func.func @transform_4(%arg0: i32) -> (i32, i32) {
    %c0_i32 = arith.constant 0 : i32
    %c0_i32_0 = arith.constant 0 : i32
    %c0_i32_1 = arith.constant 0 : i32
    return %c0_i32, %c0_i32_0 : i32, i32
  }
  func.func @transform_5(%arg0: i32) -> (i32, i32, i32) {
    %c0_i32 = arith.constant 0 : i32
    %c0_i32_0 = arith.constant 0 : i32
    %c0_i32_1 = arith.constant 0 : i32
    %c0_i32_2 = arith.constant 0 : i32
    return %c0_i32, %c0_i32_0, %c0_i32_1 : i32, i32, i32
  }
  func.func @transform_6(%arg0: i32) -> (i32, i32, i32) {
    %c0_i32 = arith.constant 0 : i32
    %c0_i32_0 = arith.constant 0 : i32
    %c0_i32_1 = arith.constant 0 : i32
    %c0_i32_2 = arith.constant 0 : i32
    return %c0_i32, %c0_i32_0, %c0_i32_1 : i32, i32, i32
  }
  func.func @transform_7(%arg0: i32) -> (i32, i32) {
    %c0_i32 = arith.constant 0 : i32
    %c0_i32_0 = arith.constant 0 : i32
    %c0_i32_1 = arith.constant 0 : i32
    return %c0_i32, %c0_i32_0 : i32, i32
  }
  func.func @transform_8(%arg0: i32) -> (i32, i32) {
    %c0_i32 = arith.constant 0 : i32
    %c0_i32_0 = arith.constant 0 : i32
    %c0_i32_1 = arith.constant 0 : i32
    return %c0_i32, %c0_i32_0 : i32, i32
  }
  func.func @transform_9(%arg0: i32) -> (i32, i32) {
    %c0_i32 = arith.constant 0 : i32
    %c0_i32_0 = arith.constant 0 : i32
    %c0_i32_1 = arith.constant 0 : i32
    return %c0_i32, %c0_i32_0 : i32, i32
  }
  func.func @transform_10(%arg0: i32) -> (i32, i32) {
    %c0_i32 = arith.constant 0 : i32
    %c0_i32_0 = arith.constant 0 : i32
    %c0_i32_1 = arith.constant 0 : i32
    return %c0_i32, %c0_i32_0 : i32, i32
  }
  func.func @transform_11(%arg0: i32) -> (i32, i32, i32) {
    %c0_i32 = arith.constant 0 : i32
    %c0_i32_0 = arith.constant 0 : i32
    %c0_i32_1 = arith.constant 0 : i32
    return %arg0, %c0_i32, %c0_i32_0 : i32, i32, i32
  }
  func.func @transform_12(%arg0: i32) -> (i32, i32, i32) {
    %c0_i32 = arith.constant 0 : i32
    %c0_i32_0 = arith.constant 0 : i32
    %c0_i32_1 = arith.constant 0 : i32
    return %arg0, %c0_i32, %c0_i32_0 : i32, i32, i32
  }
}

</mosaic_0001>

<llo_original>
// kernel: tpu_custom_call.1
$region0: #{tpu_custom_call.1}
  #allocation0 [shape = 'u32[]', space=smem, size = 0x4, offset = 0x4, fixed_abs, tag = 'smem constant byte address 0x4 - core index']
  #allocation1 [shape = 'u32[144,128]{1,0:T(1,128)}', space=vmem, size = 0x12000, scoped, tag = 'internal scratch']
  %s0 = inlined_call_operand.vmem [shape: f32[2,4,256], index: 0, kind: input, shape index: {}]
  %s1 = inlined_call_operand.vmem [shape: f32[2,1,256], index: 1, kind: input, shape index: {}]
  %s2 = inlined_call_operand.vmem [shape: f32[2,256,1], index: 2, kind: input, shape index: {}]
  %s3 = inlined_call_operand.vmem [shape: f32[32,4], index: 3, kind: input, shape index: {}]
  %s4 = inlined_call_operand.vmem [shape: f32[32,1], index: 4, kind: input, shape index: {}]
  %s5 = inlined_call_operand.vmem [shape: f32[4,32,32], index: 5, kind: input, shape index: {}]
  %s6 = inlined_call_operand.vmem [shape: f32[4,32,1], index: 6, kind: input, shape index: {}]
  %s7 = inlined_call_operand.vmem [shape: f32[4,128], index: 7, kind: input, shape index: {}]
  %s8 = inlined_call_operand.vmem [shape: f32[4,1], index: 8, kind: input, shape index: {}]
  %s9 = inlined_call_operand.vmem [shape: f32[40,160], index: 9, kind: input, shape index: {}]
  %s10 = inlined_call_operand.vmem [shape: f32[40,1], index: 10, kind: input, shape index: {}]
  %s11 = inlined_call_operand.hbm [shape: f32[2,4,256], index: 11, kind: output, shape index: {0}]
  %s12 = inlined_call_operand.vmem [shape: f32[2,40,1], index: 12, kind: output, shape index: {1}]
  %13 = xla_tuple %s11, %s12
  %s14 = sld [smem:[#allocation0]]
  $region85: #{tpu_custom_call.1} parent=0
    _
  %s16 = ssub.s32 1, %s14
  %s17 = scalar_select 0, %s16, %s14
  $region1: #{tpu_custom_call.1} parent=0
    #allocation2 [shape = 'u8[8192]{0}', space=vmem, size = 0x2000, scoped, tag = 'output window, operand 0']
    #allocation3 [shape = 's32[2]{0}', space=sflag, size = 0x8, scoped, tag = 'scoped memory for tpu_custom_call.1']
    %18 = vsyncpa [#allocation3], 0
    %s19 = scalar_lea.sflag [#allocation3], 1
    %20 = vsyncpa %s19, 0
    loop: start=0, step=1, limit=4
    $region2: #{tpu_custom_call.1} parent=1 // loop_pre_header
      _
    $region3: #{tpu_custom_call.1} parent=1 // loop_header
      %s22 = sphi 0, %s26
      %p23 = scmp.ge.s32.totalorder %s22, 4
      %s32 = sphi 0, %s34
      %s35 = sphi 0, %s32
      %s36 = sphi 0, %s35
      %s52 = sphi 0, %s36
      %s58 = sphi 0, %s60
      %s61 = sphi 0, %s58
      %s62 = sphi 0, %s61
      %s78 = sphi 0, %s62
      %s84 = sphi 0, %s86
      %s87 = sphi 0, %s84
      %s88 = sphi 0, %s87
      %s104 = sphi 0, %s88
      %s108 = sphi 0, %s108
      %s110 = sphi 0, %s108
      %s111 = sphi 0, %s110
      %s125 = sphi 0, %s111
      %s129 = sphi 0, %s129
      %s131 = sphi 0, %s129
      %s132 = sphi 0, %s131
      %s146 = sphi 0, %s132
      %s150 = sphi 0, %s150
      %s152 = sphi 0, %s150
      %s153 = sphi 0, %s152
      %s167 = sphi 0, %s153
      %s171 = sphi 0, %s171
      %s173 = sphi 0, %s171
      %s174 = sphi 0, %s173
      %s188 = sphi 0, %s174
      %s192 = sphi 0, %s192
      %s194 = sphi 0, %s192
      %s195 = sphi 0, %s194
      %s209 = sphi 0, %s195
      %s213 = sphi 0, %s213
      %s215 = sphi 0, %s213
      %s216 = sphi 0, %s215
      %s230 = sphi 0, %s216
      %s234 = sphi 0, %s234
      %s236 = sphi 0, %s234
      %s237 = sphi 0, %s236
      %s251 = sphi 0, %s237
      %s255 = sphi 0, %s255
      %s257 = sphi 0, %s255
      %s258 = sphi 0, %s257
      %s272 = sphi 0, %s258
      %s278 = sphi 0, %s280
      %s281 = sphi 0, %s278
      %s282 = sphi 0, %s281
      %s298 = sphi 0, %s282
      %s304 = sphi 0, %s306
      %s307 = sphi 0, %s304
      %s308 = sphi 0, %s307
      %s324 = sphi 0, %s308
    $region4: #{tpu_custom_call.1} parent=1 // loop_header_branch
      %25 = sbr.rel (%p23) target = $region8
    $region5: #{tpu_custom_call.1} parent=1 // loop_body
      %s27 = ssub.s32 %s22, 1
      %s28 = ssub.s32 %s22, 2
      %s29 = sadd.s32 %s22, 1
      %s30 = ssub.s32 %s22, %s29
      %p31 = scmp.eq.s32.totalorder %s30, 0
      %s33 = sadd.s32 %s32, 1
      %s34 = scalar_select %p31, %s32, %s33
      %p37 = pneg %p31
      %p38 = scmp.eq.s32.totalorder %s22, 1
      %p39 = por %p37, %p38
      %p40 = scmp.ne.s32.totalorder %s32, %s35
      %p41 = scmp.eq.s32.totalorder %s22, 0
      %p42 = por %p40, %p41
      %p43 = scmp.ne.s32.totalorder %s32, %s35
      %p44 = scmp.eq.s32.totalorder %s27, 1
      %p45 = por %p43, %p44
      %p46 = scmp.ne.s32.totalorder %s35, %s36
      %p47 = scmp.eq.s32.totalorder %s27, 0
      %p48 = por %p46, %p47
      %p49 = scmp.ne.s32.totalorder %s35, %s36
      %p50 = scmp.eq.s32.totalorder %s28, 1
      %p51 = por %p49, %p50
      %p53 = scmp.ne.s32.totalorder %s36, %s52
      %p54 = scmp.eq.s32.totalorder %s28, 0
      %p55 = por %p53, %p54
      %s56 = ssub.s32 %s22, %s29
      %p57 = scmp.eq.s32.totalorder %s56, 0
      %s59 = sadd.s32 %s58, 1
      %s60 = scalar_select %p57, %s58, %s59
      %p63 = pneg %p57
      %p64 = scmp.eq.s32.totalorder %s22, 1
      %p65 = por %p63, %p64
      %p66 = scmp.ne.s32.totalorder %s58, %s61
      %p67 = scmp.eq.s32.totalorder %s22, 0
      %p68 = por %p66, %p67
      %p69 = scmp.ne.s32.totalorder %s58, %s61
      %p70 = scmp.eq.s32.totalorder %s27, 1
      %p71 = por %p69, %p70
      %p72 = scmp.ne.s32.totalorder %s61, %s62
      %p73 = scmp.eq.s32.totalorder %s27, 0
      %p74 = por %p72, %p73
      %p75 = scmp.ne.s32.totalorder %s61, %s62
      %p76 = scmp.eq.s32.totalorder %s28, 1
      %p77 = por %p75, %p76
      %p79 = scmp.ne.s32.totalorder %s62, %s78
      %p80 = scmp.eq.s32.totalorder %s28, 0
      %p81 = por %p79, %p80
      %s82 = ssub.s32 %s22, %s29
      %p83 = scmp.eq.s32.totalorder %s82, 0
      %s85 = sadd.s32 %s84, 1
      %s86 = scalar_select %p83, %s84, %s85
      %p89 = pneg %p83
      %p90 = scmp.eq.s32.totalorder %s22, 1
      %p91 = por %p89, %p90
      %p92 = scmp.ne.s32.totalorder %s84, %s87
      %p93 = scmp.eq.s32.totalorder %s22, 0
      %p94 = por %p92, %p93
      %p95 = scmp.ne.s32.totalorder %s84, %s87
      %p96 = scmp.eq.s32.totalorder %s27, 1
      %p97 = por %p95, %p96
      %p98 = scmp.ne.s32.totalorder %s87, %s88
      %p99 = scmp.eq.s32.totalorder %s27, 0
      %p100 = por %p98, %p99
      %p101 = scmp.ne.s32.totalorder %s87, %s88
      %p102 = scmp.eq.s32.totalorder %s28, 1
      %p103 = por %p101, %p102
      %p105 = scmp.ne.s32.totalorder %s88, %s104
      %p106 = scmp.eq.s32.totalorder %s28, 0
      %p107 = por %p105, %p106
      %s109 = sadd.s32 %s108, 1
      %p112 = scmp.eq.s32.totalorder %s22, 1
      %p113 = scmp.ne.s32.totalorder %s108, %s110
      %p114 = scmp.eq.s32.totalorder %s22, 0
      %p115 = por %p113, %p114
      %p116 = scmp.ne.s32.totalorder %s108, %s110
      %p117 = scmp.eq.s32.totalorder %s27, 1
      %p118 = por %p116, %p117
      %p119 = scmp.ne.s32.totalorder %s110, %s111
      %p120 = scmp.eq.s32.totalorder %s27, 0
      %p121 = por %p119, %p120
      %p122 = scmp.ne.s32.totalorder %s110, %s111
      %p123 = scmp.eq.s32.totalorder %s28, 1
      %p124 = por %p122, %p123
      %p126 = scmp.ne.s32.totalorder %s111, %s125
      %p127 = scmp.eq.s32.totalorder %s28, 0
      %p128 = por %p126, %p127
      %s130 = sadd.s32 %s129, 1
      %p133 = scmp.eq.s32.totalorder %s22, 1
      %p134 = scmp.ne.s32.totalorder %s129, %s131
      %p135 = scmp.eq.s32.totalorder %s22, 0
      %p136 = por %p134, %p135
      %p137 = scmp.ne.s32.totalorder %s129, %s131
      %p138 = scmp.eq.s32.totalorder %s27, 1
      %p139 = por %p137, %p138
      %p140 = scmp.ne.s32.totalorder %s131, %s132
      %p141 = scmp.eq.s32.totalorder %s27, 0
      %p142 = por %p140, %p141
      %p143 = scmp.ne.s32.totalorder %s131, %s132
      %p144 = scmp.eq.s32.totalorder %s28, 1
      %p145 = por %p143, %p144
      %p147 = scmp.ne.s32.totalorder %s132, %s146
      %p148 = scmp.eq.s32.totalorder %s28, 0
      %p149 = por %p147, %p148
      %s151 = sadd.s32 %s150, 1
      %p154 = scmp.eq.s32.totalorder %s22, 1
      %p155 = scmp.ne.s32.totalorder %s150, %s152
      %p156 = scmp.eq.s32.totalorder %s22, 0
      %p157 = por %p155, %p156
      %p158 = scmp.ne.s32.totalorder %s150, %s152
      %p159 = scmp.eq.s32.totalorder %s27, 1
      %p160 = por %p158, %p159
      %p161 = scmp.ne.s32.totalorder %s152, %s153
      %p162 = scmp.eq.s32.totalorder %s27, 0
      %p163 = por %p161, %p162
      %p164 = scmp.ne.s32.totalorder %s152, %s153
      %p165 = scmp.eq.s32.totalorder %s28, 1
      %p166 = por %p164, %p165
      %p168 = scmp.ne.s32.totalorder %s153, %s167
      %p169 = scmp.eq.s32.totalorder %s28, 0
      %p170 = por %p168, %p169
      %s172 = sadd.s32 %s171, 1
      %p175 = scmp.eq.s32.totalorder %s22, 1
      %p176 = scmp.ne.s32.totalorder %s171, %s173
      %p177 = scmp.eq.s32.totalorder %s22, 0
      %p178 = por %p176, %p177
      %p179 = scmp.ne.s32.totalorder %s171, %s173
      %p180 = scmp.eq.s32.totalorder %s27, 1
      %p181 = por %p179, %p180
      %p182 = scmp.ne.s32.totalorder %s173, %s174
      %p183 = scmp.eq.s32.totalorder %s27, 0
      %p184 = por %p182, %p183
      %p185 = scmp.ne.s32.totalorder %s173, %s174
      %p186 = scmp.eq.s32.totalorder %s28, 1
      %p187 = por %p185, %p186
      %p189 = scmp.ne.s32.totalorder %s174, %s188
      %p190 = scmp.eq.s32.totalorder %s28, 0
      %p191 = por %p189, %p190
      %s193 = sadd.s32 %s192, 1
      %p196 = scmp.eq.s32.totalorder %s22, 1
      %p197 = scmp.ne.s32.totalorder %s192, %s194
      %p198 = scmp.eq.s32.totalorder %s22, 0
      %p199 = por %p197, %p198
      %p200 = scmp.ne.s32.totalorder %s192, %s194
      %p201 = scmp.eq.s32.totalorder %s27, 1
      %p202 = por %p200, %p201
      %p203 = scmp.ne.s32.totalorder %s194, %s195
      %p204 = scmp.eq.s32.totalorder %s27, 0
      %p205 = por %p203, %p204
      %p206 = scmp.ne.s32.totalorder %s194, %s195
      %p207 = scmp.eq.s32.totalorder %s28, 1
      %p208 = por %p206, %p207
      %p210 = scmp.ne.s32.totalorder %s195, %s209
      %p211 = scmp.eq.s32.totalorder %s28, 0
      %p212 = por %p210, %p211
      %s214 = sadd.s32 %s213, 1
      %p217 = scmp.eq.s32.totalorder %s22, 1
      %p218 = scmp.ne.s32.totalorder %s213, %s215
      %p219 = scmp.eq.s32.totalorder %s22, 0
      %p220 = por %p218, %p219
      %p221 = scmp.ne.s32.totalorder %s213, %s215
      %p222 = scmp.eq.s32.totalorder %s27, 1
      %p223 = por %p221, %p222
      %p224 = scmp.ne.s32.totalorder %s215, %s216
      %p225 = scmp.eq.s32.totalorder %s27, 0
      %p226 = por %p224, %p225
      %p227 = scmp.ne.s32.totalorder %s215, %s216
      %p228 = scmp.eq.s32.totalorder %s28, 1
      %p229 = por %p227, %p228
      %p231 = scmp.ne.s32.totalorder %s216, %s230
      %p232 = scmp.eq.s32.totalorder %s28, 0
      %p233 = por %p231, %p232
      %s235 = sadd.s32 %s234, 1
      %p238 = scmp.eq.s32.totalorder %s22, 1
      %p239 = scmp.ne.s32.totalorder %s234, %s236
      %p240 = scmp.eq.s32.totalorder %s22, 0
      %p241 = por %p239, %p240
      %p242 = scmp.ne.s32.totalorder %s234, %s236
      %p243 = scmp.eq.s32.totalorder %s27, 1
      %p244 = por %p242, %p243
      %p245 = scmp.ne.s32.totalorder %s236, %s237
      %p246 = scmp.eq.s32.totalorder %s27, 0
      %p247 = por %p245, %p246
      %p248 = scmp.ne.s32.totalorder %s236, %s237
      %p249 = scmp.eq.s32.totalorder %s28, 1
      %p250 = por %p248, %p249
      %p252 = scmp.ne.s32.totalorder %s237, %s251
      %p253 = scmp.eq.s32.totalorder %s28, 0
      %p254 = por %p252, %p253
      %s256 = sadd.s32 %s255, 1
      %p259 = scmp.eq.s32.totalorder %s22, 1
      %p260 = scmp.ne.s32.totalorder %s255, %s257
      %p261 = scmp.eq.s32.totalorder %s22, 0
      %p262 = por %p260, %p261
      %p263 = scmp.ne.s32.totalorder %s255, %s257
      %p264 = scmp.eq.s32.totalorder %s27, 1
      %p265 = por %p263, %p264
      %p266 = scmp.ne.s32.totalorder %s257, %s258
      %p267 = scmp.eq.s32.totalorder %s27, 0
      %p268 = por %p266, %p267
      %p269 = scmp.ne.s32.totalorder %s257, %s258
      %p270 = scmp.eq.s32.totalorder %s28, 1
      %p271 = por %p269, %p270
      %p273 = scmp.ne.s32.totalorder %s258, %s272
      %p274 = scmp.eq.s32.totalorder %s28, 0
      %p275 = por %p273, %p274
      %s276 = ssub.s32 %s22, %s29
      %p277 = scmp.eq.s32.totalorder %s276, 0
      %s279 = sadd.s32 %s278, 1
      %s280 = scalar_select %p277, %s278, %s279
      %p283 = pneg %p277
      %p284 = scmp.eq.s32.totalorder %s22, 1
      %p285 = por %p283, %p284
      %p286 = scmp.ne.s32.totalorder %s278, %s281
      %p287 = scmp.eq.s32.totalorder %s22, 0
      %p288 = por %p286, %p287
      %p289 = scmp.ne.s32.totalorder %s278, %s281
      %p290 = scmp.eq.s32.totalorder %s27, 1
      %p291 = por %p289, %p290
      %p292 = scmp.ne.s32.totalorder %s281, %s282
      %p293 = scmp.eq.s32.totalorder %s27, 0
      %p294 = por %p292, %p293
      %p295 = scmp.ne.s32.totalorder %s281, %s282
      %p296 = scmp.eq.s32.totalorder %s28, 1
      %p297 = por %p295, %p296
      %p299 = scmp.ne.s32.totalorder %s282, %s298
      %p300 = scmp.eq.s32.totalorder %s28, 0
      %p301 = por %p299, %p300
      %s302 = ssub.s32 %s22, %s29
      %p303 = scmp.eq.s32.totalorder %s302, 0
      %s305 = sadd.s32 %s304, 1
      %s306 = scalar_select %p303, %s304, %s305
      %p309 = pneg %p303
      %p310 = scmp.eq.s32.totalorder %s22, 1
      %p311 = por %p309, %p310
      %p312 = scmp.ne.s32.totalorder %s304, %s307
      %p313 = scmp.eq.s32.totalorder %s22, 0
      %p314 = por %p312, %p313
      %p315 = scmp.ne.s32.totalorder %s304, %s307
      %p316 = scmp.eq.s32.totalorder %s27, 1
      %p317 = por %p315, %p316
      %p318 = scmp.ne.s32.totalorder %s307, %s308
      %p319 = scmp.eq.s32.totalorder %s27, 0
      %p320 = por %p318, %p319
      %p321 = scmp.ne.s32.totalorder %s307, %s308
      %p322 = scmp.eq.s32.totalorder %s28, 1
      %p323 = por %p321, %p322
      %p325 = scmp.ne.s32.totalorder %s308, %s324
      %p326 = scmp.eq.s32.totalorder %s28, 0
      %p327 = por %p325, %p326
      %p328 = scmp.le.s32.totalorder 1, %s22
      %p329 = scmp.lt.s32.totalorder %s22, 3
      %p330 = pnand %p328, %p329
      %p331 = pneg %p330
      // Predicated region
      $region9: #{tpu_custom_call.1} parent=5 // pred_check
        _
      $region10: #{tpu_custom_call.1} parent=5 // pred_check_branch
        %333 = sbr.rel (%p330) target = $region12
      $region11: #{tpu_custom_call.1} parent=5 // pred_region
        %s334 = ssub.s32 %s22, 1
        // Predicated region
        $region13: #{tpu_custom_call.1} parent=11 // pred_check
          %p335 = pneg %p121
        $region14: #{tpu_custom_call.1} parent=11 // pred_check_branch
          %337 = sbr.rel (%p335) target = $region16
        $region15: #{tpu_custom_call.1} parent=11 // pred_region
          _
        $region16: #{tpu_custom_call.1} parent=11 // pred_fallthru
          _
        // Predicated region
        $region17: #{tpu_custom_call.1} parent=11 // pred_check
          %p338 = pneg %p142
        $region18: #{tpu_custom_call.1} parent=11 // pred_check_branch
          %340 = sbr.rel (%p338) target = $region20
        $region19: #{tpu_custom_call.1} parent=11 // pred_region
          _
        $region20: #{tpu_custom_call.1} parent=11 // pred_fallthru
          _
        // Predicated region
        $region21: #{tpu_custom_call.1} parent=11 // pred_check
          %p341 = pneg %p163
        $region22: #{tpu_custom_call.1} parent=11 // pred_check_branch
          %343 = sbr.rel (%p341) target = $region24
        $region23: #{tpu_custom_call.1} parent=11 // pred_region
          _
        $region24: #{tpu_custom_call.1} parent=11 // pred_fallthru
          _
        // Predicated region
        $region25: #{tpu_custom_call.1} parent=11 // pred_check
          %p344 = pneg %p184
        $region26: #{tpu_custom_call.1} parent=11 // pred_check_branch
          %346 = sbr.rel (%p344) target = $region28
        $region27: #{tpu_custom_call.1} parent=11 // pred_region
          _
        $region28: #{tpu_custom_call.1} parent=11 // pred_fallthru
          _
        // Predicated region
        $region29: #{tpu_custom_call.1} parent=11 // pred_check
          %p347 = pneg %p205
        $region30: #{tpu_custom_call.1} parent=11 // pred_check_branch
          %349 = sbr.rel (%p347) target = $region32
        $region31: #{tpu_custom_call.1} parent=11 // pred_region
          _
        $region32: #{tpu_custom_call.1} parent=11 // pred_fallthru
          _
        // Predicated region
        $region33: #{tpu_custom_call.1} parent=11 // pred_check
          %p350 = pneg %p226
        $region34: #{tpu_custom_call.1} parent=11 // pred_check_branch
          %352 = sbr.rel (%p350) target = $region36
        $region35: #{tpu_custom_call.1} parent=11 // pred_region
          _
        $region36: #{tpu_custom_call.1} parent=11 // pred_fallthru
          _
        // Predicated region
        $region37: #{tpu_custom_call.1} parent=11 // pred_check
          %p353 = pneg %p247
        $region38: #{tpu_custom_call.1} parent=11 // pred_check_branch
          %355 = sbr.rel (%p353) target = $region40
        $region39: #{tpu_custom_call.1} parent=11 // pred_region
          _
        $region40: #{tpu_custom_call.1} parent=11 // pred_fallthru
          _
        // Predicated region
        $region41: #{tpu_custom_call.1} parent=11 // pred_check
          %p356 = pneg %p268
        $region42: #{tpu_custom_call.1} parent=11 // pred_check_branch
          %358 = sbr.rel (%p356) target = $region44
        $region43: #{tpu_custom_call.1} parent=11 // pred_region
          _
        $region44: #{tpu_custom_call.1} parent=11 // pred_fallthru
          _
      $region12: #{tpu_custom_call.1} parent=5 // pred_fallthru
        _
      %p359 = scmp.lt.s32.totalorder %s22, 2
      // Predicated region
      $region45: #{tpu_custom_call.1} parent=5 // pred_check
        %p360 = pneg %p359
      $region46: #{tpu_custom_call.1} parent=5 // pred_check_branch
        %362 = sbr.rel (%p360) target = $region48
      $region47: #{tpu_custom_call.1} parent=5 // pred_region
        // Predicated region
        $region49: #{tpu_custom_call.1} parent=47 // pred_check
          %p363 = pneg %p42
        $region50: #{tpu_custom_call.1} parent=47 // pred_check_branch
          %365 = sbr.rel (%p363) target = $region52
        $region51: #{tpu_custom_call.1} parent=47 // pred_region
          %p366 = scmp.lt.s32.totalorder %s22, 1
          %s367 = scalar_select %p366, %s22, 1
          %s368 = smul.addr %s367, 2
          %s369 = smul.addr %s368, 4
          %s370 = scalar_lea.vmem %s0, %s369
        $region52: #{tpu_custom_call.1} parent=47 // pred_fallthru
          _
        // Predicated region
        $region53: #{tpu_custom_call.1} parent=47 // pred_check
          %p371 = pneg %p68
        $region54: #{tpu_custom_call.1} parent=47 // pred_check_branch
          %373 = sbr.rel (%p371) target = $region56
        $region55: #{tpu_custom_call.1} parent=47 // pred_region
          %p374 = scmp.lt.s32.totalorder %s22, 1
          %s375 = scalar_select %p374, %s22, 1
          %s376 = smul.addr %s375, 2
          %s377 = scalar_lea.vmem %s1, %s376
        $region56: #{tpu_custom_call.1} parent=47 // pred_fallthru
          _
        // Predicated region
        $region57: #{tpu_custom_call.1} parent=47 // pred_check
          %p378 = pneg %p94
        $region58: #{tpu_custom_call.1} parent=47 // pred_check_branch
          %380 = sbr.rel (%p378) target = $region60
        $region59: #{tpu_custom_call.1} parent=47 // pred_region
          %p381 = scmp.lt.s32.totalorder %s22, 1
          %s382 = scalar_select %p381, %s22, 1
          %s383 = smul.addr %s382, 32
          %s384 = smul.addr %s383, 8
          %s385 = scalar_lea.vmem %s2, %s384
        $region60: #{tpu_custom_call.1} parent=47 // pred_fallthru
          _
      $region48: #{tpu_custom_call.1} parent=5 // pred_fallthru
        _
      %p386 = scmp.le.s32.totalorder 1, %s22
      %p387 = scmp.lt.s32.totalorder %s22, 3
      %p388 = pnand %p386, %p387
      %p389 = pneg %p388
      // Predicated region
      $region61: #{tpu_custom_call.1} parent=5 // pred_check
        _
      $region62: #{tpu_custom_call.1} parent=5 // pred_check_branch
        %391 = sbr.rel (%p388) target = $region64
      $region63: #{tpu_custom_call.1} parent=5 // pred_region
        %s392 = ssub.s32 %s22, 1
        %p393 = scmp.lt.s32.totalorder %s27, 1
        %s394 = scalar_select %p393, %s27, 1
        %s395 = smul.addr %s394, 2
        %s396 = smul.addr %s395, 4
        %s397 = scalar_lea.vmem %s0, %s396
        %p398 = pneg %p48
        %p399 = pneg %p45
        %p400 = scmp.lt.s32.totalorder %s27, 1
        %s401 = scalar_select %p400, %s27, 1
        %s402 = smul.addr %s401, 2
        %s403 = scalar_lea.vmem %s1, %s402
        %p404 = pneg %p74
        %p405 = pneg %p71
        %p406 = scmp.lt.s32.totalorder %s27, 1
        %s407 = scalar_select %p406, %s27, 1
        %s408 = smul.addr %s407, 32
        %s409 = smul.addr %s408, 8
        %s410 = scalar_lea.vmem %s2, %s409
        %p411 = pneg %p100
        %p412 = pneg %p97
        %p413 = pneg %p121
        %p414 = pneg %p118
        %p415 = pneg %p142
        %p416 = pneg %p139
        %p417 = pneg %p163
        %p418 = pneg %p160
        %p419 = pneg %p184
        %p420 = pneg %p181
        %p421 = pneg %p205
        %p422 = pneg %p202
        %p423 = pneg %p226
        %p424 = pneg %p223
        %p425 = pneg %p247
        %p426 = pneg %p244
        %p427 = pneg %p268
        %p428 = pneg %p265
        %p429 = pneg %p294
        %p430 = pneg %p291
        %s431 = sand.u32 %s281, 1
        %s432 = scalar_lea.sflag [#allocation3], %s431
        %s433 = sand.u32 %s281, 1
        %s434 = smul.addr %s433, 8
        %s435 = scalar_lea.vmem [#allocation2], %s434
        %p436 = pneg %p320
        %p437 = pneg %p317
        %p438 = scmp.lt.s32.totalorder %s27, 1
        %s439 = scalar_select %p438, %s27, 1
        %s440 = smul.addr %s439, 5
        %s441 = smul.addr %s440, 8
        %s442 = scalar_lea.vmem %s12, %s441
        %p443 = scmp.lt.s32.totalorder %s27, 1
        %s444 = scalar_select %p443, %s27, 1
        %s445 = smul.addr %s444, 2
        %s446 = smul.addr %s445, 4
        %s447 = scalar_lea.vmem %s0, %s446
        %p448 = scmp.lt.s32.totalorder %s27, 1
        %s449 = scalar_select %p448, %s27, 1
        %s450 = smul.addr %s449, 2
        %s451 = scalar_lea.vmem %s1, %s450
        %p452 = scmp.lt.s32.totalorder %s27, 1
        %s453 = scalar_select %p452, %s27, 1
        %s454 = smul.addr %s453, 32
        %s455 = smul.addr %s454, 8
        %s456 = scalar_lea.vmem %s2, %s455
        %p457 = scmp.lt.s32.totalorder %s27, 1
        %s458 = scalar_select %p457, %s27, 1
        %s459 = smul.addr %s458, 5
        %s460 = smul.addr %s459, 8
        %s461 = scalar_lea.vmem %s12, %s460
        %v462 = vld [vmem:[%s447] sm:$0xff]
        %v463 = vld [vmem:[%s451] sm:$0x3]
        %v464 = vld [vmem:[%s456] sm:$0xff]
        %v465 = vld [vmem:[%s456 + $0x8] sm:$0xff]
        %v466 = vld [vmem:[%s456 + $0x10] sm:$0xff]
        %v467 = vld [vmem:[%s456 + $0x18] sm:$0xff]
        %v468 = vld [vmem:[%s456 + $0x20] sm:$0xff]
        %v469 = vld [vmem:[%s456 + $0x28] sm:$0xff]
        %v470 = vld [vmem:[%s456 + $0x30] sm:$0xff]
        %v471 = vld [vmem:[%s456 + $0x38] sm:$0xff]
        %v472 = vld [vmem:[%s456 + $0x40] sm:$0xff]
        %v473 = vld [vmem:[%s456 + $0x48] sm:$0xff]
        %v474 = vld [vmem:[%s456 + $0x50] sm:$0xff]
        %v475 = vld [vmem:[%s456 + $0x58] sm:$0xff]
        %v476 = vld [vmem:[%s456 + $0x60] sm:$0xff]
        %v477 = vld [vmem:[%s456 + $0x68] sm:$0xff]
        %v478 = vld [vmem:[%s456 + $0x70] sm:$0xff]
        %v479 = vld [vmem:[%s456 + $0x78] sm:$0xff]
        %v480 = vld [vmem:[%s456 + $0x80] sm:$0xff]
        %v481 = vld [vmem:[%s456 + $0x88] sm:$0xff]
        %v482 = vld [vmem:[%s456 + $0x90] sm:$0xff]
        %v483 = vld [vmem:[%s456 + $0x98] sm:$0xff]
        %v484 = vld [vmem:[%s456 + $0xa0] sm:$0xff]
        %v485 = vld [vmem:[%s456 + $0xa8] sm:$0xff]
        %v486 = vld [vmem:[%s456 + $0xb0] sm:$0xff]
        %v487 = vld [vmem:[%s456 + $0xb8] sm:$0xff]
        %v488 = vld [vmem:[%s456 + $0xc0] sm:$0xff]
        %v489 = vld [vmem:[%s456 + $0xc8] sm:$0xff]
        %v490 = vld [vmem:[%s456 + $0xd0] sm:$0xff]
        %v491 = vld [vmem:[%s456 + $0xd8] sm:$0xff]
        %v492 = vld [vmem:[%s456 + $0xe0] sm:$0xff]
        %v493 = vld [vmem:[%s456 + $0xe8] sm:$0xff]
        %v494 = vld [vmem:[%s456 + $0xf0] sm:$0xff]
        %v495 = vld [vmem:[%s456 + $0xf8] sm:$0xff]
        %v496 = vld [vmem:[%s3] sm:$0xff]
        %v497 = vld [vmem:[%s3 + $0x8] sm:$0xff]
        %v498 = vld [vmem:[%s3 + $0x10] sm:$0xff]
        %v499 = vld [vmem:[%s3 + $0x18] sm:$0xff]
        %v500 = vld [vmem:[%s4] sm:$0xff]
        %v501 = vld [vmem:[%s4 + $0x8] sm:$0xff]
        %v502 = vld [vmem:[%s4 + $0x10] sm:$0xff]
        %v503 = vld [vmem:[%s4 + $0x18] sm:$0xff]
        %505 = vset.pattern.permute.xlu0 0
        %506 = vperm.xlu0 %505, %v500
        %v507 = vpop.permute.xlu0 %506
        %510 = vset.pattern.permute.xlu0 0
        %511 = vperm.xlu0 %510, %v501
        %v512 = vpop.permute.xlu0 %511
        %515 = vset.pattern.permute.xlu0 0
        %516 = vperm.xlu0 %515, %v502
        %v517 = vpop.permute.xlu0 %516
        %520 = vset.pattern.permute.xlu0 0
        %521 = vperm.xlu0 %520, %v503
        %v522 = vpop.permute.xlu0 %521
        %v525 = vcombine.high %v462, %v462
        %vm526 = vcmask 31744
        %v528 = vsel %vm526, %v496, 0
        %v531 = vsel %vm526, %v497, 0
        %v534 = vsel %vm526, %v498, 0
        %v537 = vsel %vm526, %v499, 0
        %vm539 = vcmask 1043456
        %v540 = vsel %vm539, %v462, 0
        %v542 = vsel %vm539, %v525, 0
        %544 = vmatprep.subr.mxu0 0.0
        %545 = vmatpush1.msra.mxu0 0.0
        %546 = vmatprep.subr.mxu0 0.0
        %547 = vmatpush1.msra.mxu0 0.0
        %548 = vmatprep.subr.mxu0 0.0
        %549 = vmatpush1.msra.mxu0 0.0
        %550 = vmatprep.subr.mxu0 0.0
        %551 = vmatpush1.msra.mxu0 0.0
        %552 = vmatprep.subr.mxu0 0.0
        %553 = vmatpush1.msra.mxu0 0.0
        %554 = vmatprep.subr.mxu0 0.0
        %555 = vmatpush1.msra.mxu0 0.0
        %556 = vmatprep.subr.mxu0 0.0
        %557 = vmatpush1.msra.mxu0 0.0
        %558 = vmatprep.subr.mxu0 0.0
        %559 = vmatpush1.msra.mxu0 0.0
        %560 = vmatprep.subr.mxu0 0.0
        %561 = vmatpush1.msra.mxu0 0.0
        %562 = vmatprep.subr.mxu0 0.0
        %563 = vmatpush1.msra.mxu0 0.0
        %564 = vmatprep.subr.mxu0 0.0
        %565 = vmatpush1.msra.mxu0 0.0
        %566 = vmatprep.subr.mxu0 0.0
        %567 = vmatpush1.msra.mxu0 0.0
        %568 = vmatprep.subr.mxu0 0.0
        %569 = vmatpush1.msra.mxu0 0.0
        %570 = vmatprep.subr.mxu0 0.0
        %571 = vmatpush1.msra.mxu0 0.0
        %572 = vmatprep.subr.mxu0 0.0
        %573 = vmatpush1.msra.mxu0 0.0
        %574 = vmatprep.subr.mxu0 %v542
        %575 = vmatpush1.msra.mxu0 %v540
        %576 = vmatprep.subr.mxu0 0.0
        %577 = vmatpush2.msra.mxu0 0.0
        %578 = vmatprep.subr.mxu0 0.0
        %579 = vmatpush2.msra.mxu0 0.0
        %580 = vmatprep.subr.mxu0 0.0
        %581 = vmatpush2.msra.mxu0 0.0
        %582 = vmatprep.subr.mxu0 0.0
        %583 = vmatpush2.msra.mxu0 0.0
        %584 = vmatprep.subr.mxu0 0.0
        %585 = vmatpush2.msra.mxu0 0.0
        %586 = vmatprep.subr.mxu0 0.0
        %587 = vmatpush2.msra.mxu0 0.0
        %588 = vmatprep.subr.mxu0 0.0
        %589 = vmatpush2.msra.mxu0 0.0
        %590 = vmatprep.subr.mxu0 0.0
        %591 = vmatpush2.msra.mxu0 0.0
        %592 = vmatprep.subr.mxu0 0.0
        %593 = vmatpush2.msra.mxu0 0.0
        %594 = vmatprep.subr.mxu0 0.0
        %595 = vmatpush2.msra.mxu0 0.0
        %596 = vmatprep.subr.mxu0 0.0
        %597 = vmatpush2.msra.mxu0 0.0
        %598 = vmatprep.subr.mxu0 0.0
        %599 = vmatpush2.msra.mxu0 0.0
        %600 = vmatprep.subr.mxu0 0.0
        %601 = vmatpush2.msra.mxu0 0.0
        %602 = vmatprep.subr.mxu0 0.0
        %603 = vmatpush2.msra.mxu0 0.0
        %604 = vmatprep.subr.mxu0 0.0
        %605 = vmatpush2.msra.mxu0 0.0
        %606 = vmatprep.subr.mxu0 0.0
        %607 = vmatpush2.msra.mxu0 0.0
        %608 = vmatprep.mubr.f32.mxu0 0.0
        %609 = vmatmul.mubr.f32.gmra.mxu0 %v528
        %v610 = vpop.f32.mrf.mxu0
        %v611 = vadd.f32 %v507, %v610
        %v612 = vpop.f32.mrf.mxu0
        %v613 = vadd.f32 %v507, %v612
        %614 = vmatprep.mubr.f32.mxu0 0.0
        %615 = vmatmul.mubr.f32.gmra.mxu0 %v531
        %v616 = vpop.f32.mrf.mxu0
        %v617 = vadd.f32 %v512, %v616
        %v618 = vpop.f32.mrf.mxu0
        %v619 = vadd.f32 %v512, %v618
        %620 = vmatprep.mubr.f32.mxu0 0.0
        %621 = vmatmul.mubr.f32.gmra.mxu0 %v534
        %v622 = vpop.f32.mrf.mxu0
        %v623 = vadd.f32 %v517, %v622
        %v624 = vpop.f32.mrf.mxu0
        %v625 = vadd.f32 %v517, %v624
        %626 = vmatprep.mubr.f32.mxu0 0.0
        %627 = vmatmul.mubr.f32.gmra.mxu0 %v537
        %v628 = vpop.f32.mrf.mxu0
        %v629 = vadd.f32 %v522, %v628
        %v630 = vpop.f32.mrf.mxu0
        %v631 = vadd.f32 %v522, %v630
        %632 = vdwg.mxu0
        %v633 = vmax.f32 %v611, 0.0
        %v634 = vmax.f32 %v613, 0.0
        %v635 = vmax.f32 %v617, 0.0
        %v636 = vmax.f32 %v619, 0.0
        %v637 = vmax.f32 %v623, 0.0
        %v638 = vmax.f32 %v625, 0.0
        %v639 = vmax.f32 %v629, 0.0
        %v640 = vmax.f32 %v631, 0.0
        %v641 = vld [vmem:[%s5] sm:$0xff]
        %v642 = vld [vmem:[%s5 + $0x8] sm:$0xff]
        %v643 = vld [vmem:[%s5 + $0x10] sm:$0xff]
        %v644 = vld [vmem:[%s5 + $0x18] sm:$0xff]
        %v645 = vld [vmem:[%s6] sm:$0xff]
        %v646 = vld [vmem:[%s6 + $0x8] sm:$0xff]
        %v647 = vld [vmem:[%s6 + $0x10] sm:$0xff]
        %v648 = vld [vmem:[%s6 + $0x18] sm:$0xff]
        %650 = vset.pattern.permute.xlu0 0
        %651 = vperm.xlu0 %650, %v645
        %v652 = vpop.permute.xlu0 %651
        %655 = vset.pattern.permute.xlu0 0
        %656 = vperm.xlu0 %655, %v646
        %v657 = vpop.permute.xlu0 %656
        %660 = vset.pattern.permute.xlu0 0
        %661 = vperm.xlu0 %660, %v647
        %v662 = vpop.permute.xlu0 %661
        %665 = vset.pattern.permute.xlu0 0
        %666 = vperm.xlu0 %665, %v648
        %v667 = vpop.permute.xlu0 %666
        %vm669 = vcmask 261120
        %v671 = vsel %vm669, %v641, 0
        %v674 = vsel %vm669, %v642, 0
        %v677 = vsel %vm669, %v643, 0
        %v680 = vsel %vm669, %v644, 0
        %682 = vmatprep.subr.mxu0 0.0
        %683 = vmatpush1.msra.mxu0 0.0
        %684 = vmatprep.subr.mxu0 0.0
        %685 = vmatpush1.msra.mxu0 0.0
        %686 = vmatprep.subr.mxu0 0.0
        %687 = vmatpush1.msra.mxu0 0.0
        %688 = vmatprep.subr.mxu0 0.0
        %689 = vmatpush1.msra.mxu0 0.0
        %690 = vmatprep.subr.mxu0 0.0
        %691 = vmatpush1.msra.mxu0 0.0
        %692 = vmatprep.subr.mxu0 0.0
        %693 = vmatpush1.msra.mxu0 0.0
        %694 = vmatprep.subr.mxu0 0.0
        %695 = vmatpush1.msra.mxu0 0.0
        %696 = vmatprep.subr.mxu0 0.0
        %697 = vmatpush1.msra.mxu0 0.0
        %698 = vmatprep.subr.mxu0 0.0
        %699 = vmatpush1.msra.mxu0 0.0
        %700 = vmatprep.subr.mxu0 0.0
        %701 = vmatpush1.msra.mxu0 0.0
        %702 = vmatprep.subr.mxu0 0.0
        %703 = vmatpush1.msra.mxu0 0.0
        %704 = vmatprep.subr.mxu0 0.0
        %705 = vmatpush1.msra.mxu0 0.0
        %706 = vmatprep.subr.mxu0 %v640
        %707 = vmatpush1.msra.mxu0 %v639
        %708 = vmatprep.subr.mxu0 %v638
        %709 = vmatpush1.msra.mxu0 %v637
        %710 = vmatprep.subr.mxu0 %v636
        %711 = vmatpush1.msra.mxu0 %v635
        %712 = vmatprep.subr.mxu0 %v634
        %713 = vmatpush1.msra.mxu0 %v633
        %714 = vmatprep.subr.mxu0 0.0
        %715 = vmatpush2.msra.mxu0 0.0
        %716 = vmatprep.subr.mxu0 0.0
        %717 = vmatpush2.msra.mxu0 0.0
        %718 = vmatprep.subr.mxu0 0.0
        %719 = vmatpush2.msra.mxu0 0.0
        %720 = vmatprep.subr.mxu0 0.0
        %721 = vmatpush2.msra.mxu0 0.0
        %722 = vmatprep.subr.mxu0 0.0
        %723 = vmatpush2.msra.mxu0 0.0
        %724 = vmatprep.subr.mxu0 0.0
        %725 = vmatpush2.msra.mxu0 0.0
        %726 = vmatprep.subr.mxu0 0.0
        %727 = vmatpush2.msra.mxu0 0.0
        %728 = vmatprep.subr.mxu0 0.0
        %729 = vmatpush2.msra.mxu0 0.0
        %730 = vmatprep.subr.mxu0 0.0
        %731 = vmatpush2.msra.mxu0 0.0
        %732 = vmatprep.subr.mxu0 0.0
        %733 = vmatpush2.msra.mxu0 0.0
        %734 = vmatprep.subr.mxu0 0.0
        %735 = vmatpush2.msra.mxu0 0.0
        %736 = vmatprep.subr.mxu0 0.0
        %737 = vmatpush2.msra.mxu0 0.0
        %738 = vmatprep.subr.mxu0 0.0
        %739 = vmatpush2.msra.mxu0 0.0
        %740 = vmatprep.subr.mxu0 0.0
        %741 = vmatpush2.msra.mxu0 0.0
        %742 = vmatprep.subr.mxu0 0.0
        %743 = vmatpush2.msra.mxu0 0.0
        %744 = vmatprep.subr.mxu0 0.0
        %745 = vmatpush2.msra.mxu0 0.0
        %746 = vmatprep.mubr.f32.mxu0 0.0
        %747 = vmatmul.mubr.f32.gmra.mxu0 %v671
        %v748 = vpop.f32.mrf.mxu0
        %v749 = vadd.f32 %v652, %v748
        %v750 = vpop.f32.mrf.mxu0
        %v751 = vadd.f32 %v652, %v750
        %752 = vmatprep.mubr.f32.mxu0 0.0
        %753 = vmatmul.mubr.f32.gmra.mxu0 %v674
        %v754 = vpop.f32.mrf.mxu0
        %v755 = vadd.f32 %v657, %v754
        %v756 = vpop.f32.mrf.mxu0
        %v757 = vadd.f32 %v657, %v756
        %758 = vmatprep.mubr.f32.mxu0 0.0
        %759 = vmatmul.mubr.f32.gmra.mxu0 %v677
        %v760 = vpop.f32.mrf.mxu0
        %v761 = vadd.f32 %v662, %v760
        %v762 = vpop.f32.mrf.mxu0
        %v763 = vadd.f32 %v662, %v762
        %764 = vmatprep.mubr.f32.mxu0 0.0
        %765 = vmatmul.mubr.f32.gmra.mxu0 %v680
        %v766 = vpop.f32.mrf.mxu0
        %v767 = vadd.f32 %v667, %v766
        %v768 = vpop.f32.mrf.mxu0
        %v769 = vadd.f32 %v667, %v768
        %770 = vdwg.mxu0
        %v771 = vmax.f32 %v749, 0.0
        %v772 = vmax.f32 %v751, 0.0
        %v773 = vmax.f32 %v755, 0.0
        %v774 = vmax.f32 %v757, 0.0
        %v775 = vmax.f32 %v761, 0.0
        %v776 = vmax.f32 %v763, 0.0
        %v777 = vmax.f32 %v767, 0.0
        %v778 = vmax.f32 %v769, 0.0
        %s779 = scalar_lea.vmem %s5, 32
        %v780 = vld [vmem:[%s779] sm:$0xff]
        %v781 = vld [vmem:[%s779 + $0x8] sm:$0xff]
        %v782 = vld [vmem:[%s779 + $0x10] sm:$0xff]
        %v783 = vld [vmem:[%s779 + $0x18] sm:$0xff]
        %s784 = scalar_lea.vmem %s6, 32
        %v785 = vld [vmem:[%s784] sm:$0xff]
        %v786 = vld [vmem:[%s784 + $0x8] sm:$0xff]
        %v787 = vld [vmem:[%s784 + $0x10] sm:$0xff]
        %v788 = vld [vmem:[%s784 + $0x18] sm:$0xff]
        %790 = vset.pattern.permute.xlu0 0
        %791 = vperm.xlu0 %790, %v785
        %v792 = vpop.permute.xlu0 %791
        %795 = vset.pattern.permute.xlu0 0
        %796 = vperm.xlu0 %795, %v786
        %v797 = vpop.permute.xlu0 %796
        %800 = vset.pattern.permute.xlu0 0
        %801 = vperm.xlu0 %800, %v787
        %v802 = vpop.permute.xlu0 %801
        %805 = vset.pattern.permute.xlu0 0
        %806 = vperm.xlu0 %805, %v788
        %v807 = vpop.permute.xlu0 %806
        %v810 = vsel %vm669, %v780, 0
        %v813 = vsel %vm669, %v781, 0
        %v816 = vsel %vm669, %v782, 0
        %v819 = vsel %vm669, %v783, 0
        %821 = vmatprep.subr.mxu0 0.0
        %822 = vmatpush1.msra.mxu0 0.0
        %823 = vmatprep.subr.mxu0 0.0
        %824 = vmatpush1.msra.mxu0 0.0
        %825 = vmatprep.subr.mxu0 0.0
        %826 = vmatpush1.msra.mxu0 0.0
        %827 = vmatprep.subr.mxu0 0.0
        %828 = vmatpush1.msra.mxu0 0.0
        %829 = vmatprep.subr.mxu0 0.0
        %830 = vmatpush1.msra.mxu0 0.0
        %831 = vmatprep.subr.mxu0 0.0
        %832 = vmatpush1.msra.mxu0 0.0
        %833 = vmatprep.subr.mxu0 0.0
        %834 = vmatpush1.msra.mxu0 0.0
        %835 = vmatprep.subr.mxu0 0.0
        %836 = vmatpush1.msra.mxu0 0.0
        %837 = vmatprep.subr.mxu0 0.0
        %838 = vmatpush1.msra.mxu0 0.0
        %839 = vmatprep.subr.mxu0 0.0
        %840 = vmatpush1.msra.mxu0 0.0
        %841 = vmatprep.subr.mxu0 0.0
        %842 = vmatpush1.msra.mxu0 0.0
        %843 = vmatprep.subr.mxu0 0.0
        %844 = vmatpush1.msra.mxu0 0.0
        %845 = vmatprep.subr.mxu0 %v778
        %846 = vmatpush1.msra.mxu0 %v777
        %847 = vmatprep.subr.mxu0 %v776
        %848 = vmatpush1.msra.mxu0 %v775
        %849 = vmatprep.subr.mxu0 %v774
        %850 = vmatpush1.msra.mxu0 %v773
        %851 = vmatprep.subr.mxu0 %v772
        %852 = vmatpush1.msra.mxu0 %v771
        %853 = vmatprep.subr.mxu0 0.0
        %854 = vmatpush2.msra.mxu0 0.0
        %855 = vmatprep.subr.mxu0 0.0
        %856 = vmatpush2.msra.mxu0 0.0
        %857 = vmatprep.subr.mxu0 0.0
        %858 = vmatpush2.msra.mxu0 0.0
        %859 = vmatprep.subr.mxu0 0.0
        %860 = vmatpush2.msra.mxu0 0.0
        %861 = vmatprep.subr.mxu0 0.0
        %862 = vmatpush2.msra.mxu0 0.0
        %863 = vmatprep.subr.mxu0 0.0
        %864 = vmatpush2.msra.mxu0 0.0
        %865 = vmatprep.subr.mxu0 0.0
        %866 = vmatpush2.msra.mxu0 0.0
        %867 = vmatprep.subr.mxu0 0.0
        %868 = vmatpush2.msra.mxu0 0.0
        %869 = vmatprep.subr.mxu0 0.0
        %870 = vmatpush2.msra.mxu0 0.0
        %871 = vmatprep.subr.mxu0 0.0
        %872 = vmatpush2.msra.mxu0 0.0
        %873 = vmatprep.subr.mxu0 0.0
        %874 = vmatpush2.msra.mxu0 0.0
        %875 = vmatprep.subr.mxu0 0.0
        %876 = vmatpush2.msra.mxu0 0.0
        %877 = vmatprep.subr.mxu0 0.0
        %878 = vmatpush2.msra.mxu0 0.0
        %879 = vmatprep.subr.mxu0 0.0
        %880 = vmatpush2.msra.mxu0 0.0
        %881 = vmatprep.subr.mxu0 0.0
        %882 = vmatpush2.msra.mxu0 0.0
        %883 = vmatprep.subr.mxu0 0.0
        %884 = vmatpush2.msra.mxu0 0.0
        %885 = vmatprep.mubr.f32.mxu0 0.0
        %886 = vmatmul.mubr.f32.gmra.mxu0 %v810
        %v887 = vpop.f32.mrf.mxu0
        %v888 = vadd.f32 %v792, %v887
        %v889 = vpop.f32.mrf.mxu0
        %v890 = vadd.f32 %v792, %v889
        %891 = vmatprep.mubr.f32.mxu0 0.0
        %892 = vmatmul.mubr.f32.gmra.mxu0 %v813
        %v893 = vpop.f32.mrf.mxu0
        %v894 = vadd.f32 %v797, %v893
        %v895 = vpop.f32.mrf.mxu0
        %v896 = vadd.f32 %v797, %v895
        %897 = vmatprep.mubr.f32.mxu0 0.0
        %898 = vmatmul.mubr.f32.gmra.mxu0 %v816
        %v899 = vpop.f32.mrf.mxu0
        %v900 = vadd.f32 %v802, %v899
        %v901 = vpop.f32.mrf.mxu0
        %v902 = vadd.f32 %v802, %v901
        %903 = vmatprep.mubr.f32.mxu0 0.0
        %904 = vmatmul.mubr.f32.gmra.mxu0 %v819
        %v905 = vpop.f32.mrf.mxu0
        %v906 = vadd.f32 %v807, %v905
        %v907 = vpop.f32.mrf.mxu0
        %v908 = vadd.f32 %v807, %v907
        %909 = vdwg.mxu0
        %v910 = vmax.f32 %v888, 0.0
        %v911 = vmax.f32 %v890, 0.0
        %v912 = vmax.f32 %v894, 0.0
        %v913 = vmax.f32 %v896, 0.0
        %v914 = vmax.f32 %v900, 0.0
        %v915 = vmax.f32 %v902, 0.0
        %v916 = vmax.f32 %v906, 0.0
        %v917 = vmax.f32 %v908, 0.0
        %s918 = scalar_lea.vmem %s5, 64
        %v919 = vld [vmem:[%s918] sm:$0xff]
        %v920 = vld [vmem:[%s918 + $0x8] sm:$0xff]
        %v921 = vld [vmem:[%s918 + $0x10] sm:$0xff]
        %v922 = vld [vmem:[%s918 + $0x18] sm:$0xff]
        %s923 = scalar_lea.vmem %s6, 64
        %v924 = vld [vmem:[%s923] sm:$0xff]
        %v925 = vld [vmem:[%s923 + $0x8] sm:$0xff]
        %v926 = vld [vmem:[%s923 + $0x10] sm:$0xff]
        %v927 = vld [vmem:[%s923 + $0x18] sm:$0xff]
        %929 = vset.pattern.permute.xlu0 0
        %930 = vperm.xlu0 %929, %v924
        %v931 = vpop.permute.xlu0 %930
        %934 = vset.pattern.permute.xlu0 0
        %935 = vperm.xlu0 %934, %v925
        %v936 = vpop.permute.xlu0 %935
        %939 = vset.pattern.permute.xlu0 0
        %940 = vperm.xlu0 %939, %v926
        %v941 = vpop.permute.xlu0 %940
        %944 = vset.pattern.permute.xlu0 0
        %945 = vperm.xlu0 %944, %v927
        %v946 = vpop.permute.xlu0 %945
        %v949 = vsel %vm669, %v919, 0
        %v952 = vsel %vm669, %v920, 0
        %v955 = vsel %vm669, %v921, 0
        %v958 = vsel %vm669, %v922, 0
        %960 = vmatprep.subr.mxu0 0.0
        %961 = vmatpush1.msra.mxu0 0.0
        %962 = vmatprep.subr.mxu0 0.0
        %963 = vmatpush1.msra.mxu0 0.0
        %964 = vmatprep.subr.mxu0 0.0
        %965 = vmatpush1.msra.mxu0 0.0
        %966 = vmatprep.subr.mxu0 0.0
        %967 = vmatpush1.msra.mxu0 0.0
        %968 = vmatprep.subr.mxu0 0.0
        %969 = vmatpush1.msra.mxu0 0.0
        %970 = vmatprep.subr.mxu0 0.0
        %971 = vmatpush1.msra.mxu0 0.0
        %972 = vmatprep.subr.mxu0 0.0
        %973 = vmatpush1.msra.mxu0 0.0
        %974 = vmatprep.subr.mxu0 0.0
        %975 = vmatpush1.msra.mxu0 0.0
        %976 = vmatprep.subr.mxu0 0.0
        %977 = vmatpush1.msra.mxu0 0.0
        %978 = vmatprep.subr.mxu0 0.0
        %979 = vmatpush1.msra.mxu0 0.0
        %980 = vmatprep.subr.mxu0 0.0
        %981 = vmatpush1.msra.mxu0 0.0
        %982 = vmatprep.subr.mxu0 0.0
        %983 = vmatpush1.msra.mxu0 0.0
        %984 = vmatprep.subr.mxu0 %v917
        %985 = vmatpush1.msra.mxu0 %v916
        %986 = vmatprep.subr.mxu0 %v915
        %987 = vmatpush1.msra.mxu0 %v914
        %988 = vmatprep.subr.mxu0 %v913
        %989 = vmatpush1.msra.mxu0 %v912
        %990 = vmatprep.subr.mxu0 %v911
        %991 = vmatpush1.msra.mxu0 %v910
        %992 = vmatprep.subr.mxu0 0.0
        %993 = vmatpush2.msra.mxu0 0.0
        %994 = vmatprep.subr.mxu0 0.0
        %995 = vmatpush2.msra.mxu0 0.0
        %996 = vmatprep.subr.mxu0 0.0
        %997 = vmatpush2.msra.mxu0 0.0
        %998 = vmatprep.subr.mxu0 0.0
        %999 = vmatpush2.msra.mxu0 0.0
        %1000 = vmatprep.subr.mxu0 0.0
        %1001 = vmatpush2.msra.mxu0 0.0
        %1002 = vmatprep.subr.mxu0 0.0
        %1003 = vmatpush2.msra.mxu0 0.0
        %1004 = vmatprep.subr.mxu0 0.0
        %1005 = vmatpush2.msra.mxu0 0.0
        %1006 = vmatprep.subr.mxu0 0.0
        %1007 = vmatpush2.msra.mxu0 0.0
        %1008 = vmatprep.subr.mxu0 0.0
        %1009 = vmatpush2.msra.mxu0 0.0
        %1010 = vmatprep.subr.mxu0 0.0
        %1011 = vmatpush2.msra.mxu0 0.0
        %1012 = vmatprep.subr.mxu0 0.0
        %1013 = vmatpush2.msra.mxu0 0.0
        %1014 = vmatprep.subr.mxu0 0.0
        %1015 = vmatpush2.msra.mxu0 0.0
        %1016 = vmatprep.subr.mxu0 0.0
        %1017 = vmatpush2.msra.mxu0 0.0
        %1018 = vmatprep.subr.mxu0 0.0
        %1019 = vmatpush2.msra.mxu0 0.0
        %1020 = vmatprep.subr.mxu0 0.0
        %1021 = vmatpush2.msra.mxu0 0.0
        %1022 = vmatprep.subr.mxu0 0.0
        %1023 = vmatpush2.msra.mxu0 0.0
        %1024 = vmatprep.mubr.f32.mxu0 0.0
        %1025 = vmatmul.mubr.f32.gmra.mxu0 %v949
        %v1026 = vpop.f32.mrf.mxu0
        %v1027 = vadd.f32 %v931, %v1026
        %v1028 = vpop.f32.mrf.mxu0
        %v1029 = vadd.f32 %v931, %v1028
        %1030 = vmatprep.mubr.f32.mxu0 0.0
        %1031 = vmatmul.mubr.f32.gmra.mxu0 %v952
        %v1032 = vpop.f32.mrf.mxu0
        %v1033 = vadd.f32 %v936, %v1032
        %v1034 = vpop.f32.mrf.mxu0
        %v1035 = vadd.f32 %v936, %v1034
        %1036 = vmatprep.mubr.f32.mxu0 0.0
        %1037 = vmatmul.mubr.f32.gmra.mxu0 %v955
        %v1038 = vpop.f32.mrf.mxu0
        %v1039 = vadd.f32 %v941, %v1038
        %v1040 = vpop.f32.mrf.mxu0
        %v1041 = vadd.f32 %v941, %v1040
        %1042 = vmatprep.mubr.f32.mxu0 0.0
        %1043 = vmatmul.mubr.f32.gmra.mxu0 %v958
        %v1044 = vpop.f32.mrf.mxu0
        %v1045 = vadd.f32 %v946, %v1044
        %v1046 = vpop.f32.mrf.mxu0
        %v1047 = vadd.f32 %v946, %v1046
        %1048 = vdwg.mxu0
        %v1049 = vmax.f32 %v1027, 0.0
        %v1050 = vmax.f32 %v1029, 0.0
        %v1051 = vmax.f32 %v1033, 0.0
        %v1052 = vmax.f32 %v1035, 0.0
        %v1053 = vmax.f32 %v1039, 0.0
        %v1054 = vmax.f32 %v1041, 0.0
        %v1055 = vmax.f32 %v1045, 0.0
        %v1056 = vmax.f32 %v1047, 0.0
        %s1057 = scalar_lea.vmem %s5, 96
        %v1058 = vld [vmem:[%s1057] sm:$0xff]
        %v1059 = vld [vmem:[%s1057 + $0x8] sm:$0xff]
        %v1060 = vld [vmem:[%s1057 + $0x10] sm:$0xff]
        %v1061 = vld [vmem:[%s1057 + $0x18] sm:$0xff]
        %s1062 = scalar_lea.vmem %s6, 96
        %v1063 = vld [vmem:[%s1062] sm:$0xff]
        %v1064 = vld [vmem:[%s1062 + $0x8] sm:$0xff]
        %v1065 = vld [vmem:[%s1062 + $0x10] sm:$0xff]
        %v1066 = vld [vmem:[%s1062 + $0x18] sm:$0xff]
        %1068 = vset.pattern.permute.xlu0 0
        %1069 = vperm.xlu0 %1068, %v1063
        %v1070 = vpop.permute.xlu0 %1069
        %1073 = vset.pattern.permute.xlu0 0
        %1074 = vperm.xlu0 %1073, %v1064
        %v1075 = vpop.permute.xlu0 %1074
        %1078 = vset.pattern.permute.xlu0 0
        %1079 = vperm.xlu0 %1078, %v1065
        %v1080 = vpop.permute.xlu0 %1079
        %1083 = vset.pattern.permute.xlu0 0
        %1084 = vperm.xlu0 %1083, %v1066
        %v1085 = vpop.permute.xlu0 %1084
        %v1088 = vsel %vm669, %v1058, 0
        %v1091 = vsel %vm669, %v1059, 0
        %v1094 = vsel %vm669, %v1060, 0
        %v1097 = vsel %vm669, %v1061, 0
        %1099 = vmatprep.subr.mxu0 0.0
        %1100 = vmatpush1.msra.mxu0 0.0
        %1101 = vmatprep.subr.mxu0 0.0
        %1102 = vmatpush1.msra.mxu0 0.0
        %1103 = vmatprep.subr.mxu0 0.0
        %1104 = vmatpush1.msra.mxu0 0.0
        %1105 = vmatprep.subr.mxu0 0.0
        %1106 = vmatpush1.msra.mxu0 0.0
        %1107 = vmatprep.subr.mxu0 0.0
        %1108 = vmatpush1.msra.mxu0 0.0
        %1109 = vmatprep.subr.mxu0 0.0
        %1110 = vmatpush1.msra.mxu0 0.0
        %1111 = vmatprep.subr.mxu0 0.0
        %1112 = vmatpush1.msra.mxu0 0.0
        %1113 = vmatprep.subr.mxu0 0.0
        %1114 = vmatpush1.msra.mxu0 0.0
        %1115 = vmatprep.subr.mxu0 0.0
        %1116 = vmatpush1.msra.mxu0 0.0
        %1117 = vmatprep.subr.mxu0 0.0
        %1118 = vmatpush1.msra.mxu0 0.0
        %1119 = vmatprep.subr.mxu0 0.0
        %1120 = vmatpush1.msra.mxu0 0.0
        %1121 = vmatprep.subr.mxu0 0.0
        %1122 = vmatpush1.msra.mxu0 0.0
        %1123 = vmatprep.subr.mxu0 %v1056
        %1124 = vmatpush1.msra.mxu0 %v1055
        %1125 = vmatprep.subr.mxu0 %v1054
        %1126 = vmatpush1.msra.mxu0 %v1053
        %1127 = vmatprep.subr.mxu0 %v1052
        %1128 = vmatpush1.msra.mxu0 %v1051
        %1129 = vmatprep.subr.mxu0 %v1050
        %1130 = vmatpush1.msra.mxu0 %v1049
        %1131 = vmatprep.subr.mxu0 0.0
        %1132 = vmatpush2.msra.mxu0 0.0
        %1133 = vmatprep.subr.mxu0 0.0
        %1134 = vmatpush2.msra.mxu0 0.0
        %1135 = vmatprep.subr.mxu0 0.0
        %1136 = vmatpush2.msra.mxu0 0.0
        %1137 = vmatprep.subr.mxu0 0.0
        %1138 = vmatpush2.msra.mxu0 0.0
        %1139 = vmatprep.subr.mxu0 0.0
        %1140 = vmatpush2.msra.mxu0 0.0
        %1141 = vmatprep.subr.mxu0 0.0
        %1142 = vmatpush2.msra.mxu0 0.0
        %1143 = vmatprep.subr.mxu0 0.0
        %1144 = vmatpush2.msra.mxu0 0.0
        %1145 = vmatprep.subr.mxu0 0.0
        %1146 = vmatpush2.msra.mxu0 0.0
        %1147 = vmatprep.subr.mxu0 0.0
        %1148 = vmatpush2.msra.mxu0 0.0
        %1149 = vmatprep.subr.mxu0 0.0
        %1150 = vmatpush2.msra.mxu0 0.0
        %1151 = vmatprep.subr.mxu0 0.0
        %1152 = vmatpush2.msra.mxu0 0.0
        %1153 = vmatprep.subr.mxu0 0.0
        %1154 = vmatpush2.msra.mxu0 0.0
        %1155 = vmatprep.subr.mxu0 0.0
        %1156 = vmatpush2.msra.mxu0 0.0
        %1157 = vmatprep.subr.mxu0 0.0
        %1158 = vmatpush2.msra.mxu0 0.0
        %1159 = vmatprep.subr.mxu0 0.0
        %1160 = vmatpush2.msra.mxu0 0.0
        %1161 = vmatprep.subr.mxu0 0.0
        %1162 = vmatpush2.msra.mxu0 0.0
        %1163 = vmatprep.mubr.f32.mxu0 0.0
        %1164 = vmatmul.mubr.f32.gmra.mxu0 %v1088
        %v1165 = vpop.f32.mrf.mxu0
        %v1166 = vadd.f32 %v1070, %v1165
        %v1167 = vpop.f32.mrf.mxu0
        %v1168 = vadd.f32 %v1070, %v1167
        %1169 = vmatprep.mubr.f32.mxu0 0.0
        %1170 = vmatmul.mubr.f32.gmra.mxu0 %v1091
        %v1171 = vpop.f32.mrf.mxu0
        %v1172 = vadd.f32 %v1075, %v1171
        %v1173 = vpop.f32.mrf.mxu0
        %v1174 = vadd.f32 %v1075, %v1173
        %1175 = vmatprep.mubr.f32.mxu0 0.0
        %1176 = vmatmul.mubr.f32.gmra.mxu0 %v1094
        %v1177 = vpop.f32.mrf.mxu0
        %v1178 = vadd.f32 %v1080, %v1177
        %v1179 = vpop.f32.mrf.mxu0
        %v1180 = vadd.f32 %v1080, %v1179
        %1181 = vmatprep.mubr.f32.mxu0 0.0
        %1182 = vmatmul.mubr.f32.gmra.mxu0 %v1097
        %v1183 = vpop.f32.mrf.mxu0
        %v1184 = vadd.f32 %v1085, %v1183
        %v1185 = vpop.f32.mrf.mxu0
        %v1186 = vadd.f32 %v1085, %v1185
        %1187 = vdwg.mxu0
        %v1188 = vmax.f32 %v1166, 0.0
        %v1189 = vmax.f32 %v1168, 0.0
        %v1190 = vmax.f32 %v1172, 0.0
        %v1191 = vmax.f32 %v1174, 0.0
        %v1192 = vmax.f32 %v1178, 0.0
        %v1193 = vmax.f32 %v1180, 0.0
        %v1194 = vmax.f32 %v1184, 0.0
        %v1195 = vmax.f32 %v1186, 0.0
        %v1196 = vld [vmem:[%s7] sm:$0xf]
        %v1197 = vld [vmem:[%s8] sm:$0xf]
        %1199 = vset.pattern.permute.xlu0 0
        %1200 = vperm.xlu0 %1199, %v1197
        %v1201 = vpop.permute.xlu0 %1200
        %1203 = vmatprep.subr.mxu0 %v1195
        %1204 = vmatpush1.msra.mxu0 %v1194
        %1205 = vmatprep.subr.mxu0 %v1193
        %1206 = vmatpush1.msra.mxu0 %v1192
        %1207 = vmatprep.subr.mxu0 %v1191
        %1208 = vmatpush1.msra.mxu0 %v1190
        %1209 = vmatprep.subr.mxu0 %v1189
        %1210 = vmatpush1.msra.mxu0 %v1188
        %1211 = vmatprep.subr.mxu0 %v1056
        %1212 = vmatpush1.msra.mxu0 %v1055
        %1213 = vmatprep.subr.mxu0 %v1054
        %1214 = vmatpush1.msra.mxu0 %v1053
        %1215 = vmatprep.subr.mxu0 %v1052
        %1216 = vmatpush1.msra.mxu0 %v1051
        %1217 = vmatprep.subr.mxu0 %v1050
        %1218 = vmatpush1.msra.mxu0 %v1049
        %1219 = vmatprep.subr.mxu0 %v917
        %1220 = vmatpush1.msra.mxu0 %v916
        %1221 = vmatprep.subr.mxu0 %v915
        %1222 = vmatpush1.msra.mxu0 %v914
        %1223 = vmatprep.subr.mxu0 %v913
        %1224 = vmatpush1.msra.mxu0 %v912
        %1225 = vmatprep.subr.mxu0 %v911
        %1226 = vmatpush1.msra.mxu0 %v910
        %1227 = vmatprep.subr.mxu0 %v778
        %1228 = vmatpush1.msra.mxu0 %v777
        %1229 = vmatprep.subr.mxu0 %v776
        %1230 = vmatpush1.msra.mxu0 %v775
        %1231 = vmatprep.subr.mxu0 %v774
        %1232 = vmatpush1.msra.mxu0 %v773
        %1233 = vmatprep.subr.mxu0 %v772
        %1234 = vmatpush1.msra.mxu0 %v771
        %1235 = vmatprep.subr.mxu0 0.0
        %1236 = vmatpush2.msra.mxu0 0.0
        %1237 = vmatprep.subr.mxu0 0.0
        %1238 = vmatpush2.msra.mxu0 0.0
        %1239 = vmatprep.subr.mxu0 0.0
        %1240 = vmatpush2.msra.mxu0 0.0
        %1241 = vmatprep.subr.mxu0 0.0
        %1242 = vmatpush2.msra.mxu0 0.0
        %1243 = vmatprep.subr.mxu0 0.0
        %1244 = vmatpush2.msra.mxu0 0.0
        %1245 = vmatprep.subr.mxu0 0.0
        %1246 = vmatpush2.msra.mxu0 0.0
        %1247 = vmatprep.subr.mxu0 0.0
        %1248 = vmatpush2.msra.mxu0 0.0
        %1249 = vmatprep.subr.mxu0 0.0
        %1250 = vmatpush2.msra.mxu0 0.0
        %1251 = vmatprep.subr.mxu0 0.0
        %1252 = vmatpush2.msra.mxu0 0.0
        %1253 = vmatprep.subr.mxu0 0.0
        %1254 = vmatpush2.msra.mxu0 0.0
        %1255 = vmatprep.subr.mxu0 0.0
        %1256 = vmatpush2.msra.mxu0 0.0
        %1257 = vmatprep.subr.mxu0 0.0
        %1258 = vmatpush2.msra.mxu0 0.0
        %1259 = vmatprep.subr.mxu0 0.0
        %1260 = vmatpush2.msra.mxu0 0.0
        %1261 = vmatprep.subr.mxu0 0.0
        %1262 = vmatpush2.msra.mxu0 0.0
        %1263 = vmatprep.subr.mxu0 0.0
        %1264 = vmatpush2.msra.mxu0 0.0
        %1265 = vmatprep.subr.mxu0 0.0
        %1266 = vmatpush2.msra.mxu0 0.0
        %1267 = vmatprep.mubr.f32.mxu0 0.0
        %1268 = vmatmul.mubr.f32.gmra.mxu0 %v1196
        %v1269 = vpop.f32.mrf.mxu0
        %v1270 = vadd.f32 %v1201, %v1269
        %v1271 = vpop.f32.mrf.mxu0
        %v1272 = vadd.f32 %v1201, %v1271
        %1273 = vdwg.mxu0
        %v1274 = vxor.u32 %v1270, 2147483648
        %v1275 = vxor.u32 %v1272, 2147483648
        %v1276 = vmul.f32 %v1274, 1.442695
        %v1277 = vpow.pop %v1276
        %v1278 = vmul.f32 %v1275, 1.442695
        %v1279 = vpow.pop %v1278
        %v1280 = vadd.f32 %v1277, 1.0
        %v1281 = vadd.f32 %v1279, 1.0
        %v1282 = vrcp.pop %v1280
        %v1283 = vmul.f32 1.0, %v1282
        %v1284 = vrcp.pop %v1281
        %v1285 = vmul.f32 1.0, %v1284
        %v1287 = vlaneseq
        %v1288 = vshrl.u32 %v1287, 7
        %v1289 = vsub.s32 0, %v1288
        %v1290 = vrot.slane %v463, %v1289
        %v1291 = vlaneseq
        %v1292 = vshrl.u32 %v1291, 7
        %v1293 = vsub.s32 1, %v1292
        %v1294 = vrot.slane %v463, %v1293
        %v1297 = vmul.f32 %v1283, %v1290
        %v1298 = vmul.f32 %v1285, %v1294
        %v1301 = vcombine.low %v1297, %v1298
        %1303 = vst [vmem:[%s435] sm:$0xff] %v1301
        %vm1304 = vcmask 1040384
        %v1305 = vsel %vm1304, %v1290, 0.0
        %v1306 = vsel %vm1304, %v1294, 0.0
        %v1307 = vadd.f32 %v1305, %v1306
        %1308 = vadd.xlane.f32.xlu0 %v1307
        %v1309 = vpop.xlane.xlu0 %1308
        %v1310 = vadd.f32 %v1309, 1e-06
        %v1311 = vrcp.pop %v1310
        %1312 = vmatprep.subr.mxu0 0.0
        %1313 = vmatpush1.msra.mxu0 %v479
        %1314 = vmatprep.subr.mxu0 0.0
        %1315 = vmatpush1.msra.mxu0 %v478
        %1316 = vmatprep.subr.mxu0 0.0
        %1317 = vmatpush1.msra.mxu0 %v477
        %1318 = vmatprep.subr.mxu0 0.0
        %1319 = vmatpush1.msra.mxu0 %v476
        %1320 = vmatprep.subr.mxu0 0.0
        %1321 = vmatpush1.msra.mxu0 %v475
        %1322 = vmatprep.subr.mxu0 0.0
        %1323 = vmatpush1.msra.mxu0 %v474
        %1324 = vmatprep.subr.mxu0 0.0
        %1325 = vmatpush1.msra.mxu0 %v473
        %1326 = vmatprep.subr.mxu0 0.0
        %1327 = vmatpush1.msra.mxu0 %v472
        %1328 = vmatprep.subr.mxu0 0.0
        %1329 = vmatpush1.msra.mxu0 %v471
        %1330 = vmatprep.subr.mxu0 0.0
        %1331 = vmatpush1.msra.mxu0 %v470
        %1332 = vmatprep.subr.mxu0 0.0
        %1333 = vmatpush1.msra.mxu0 %v469
        %1334 = vmatprep.subr.mxu0 0.0
        %1335 = vmatpush1.msra.mxu0 %v468
        %1336 = vmatprep.subr.mxu0 0.0
        %1337 = vmatpush1.msra.mxu0 %v467
        %1338 = vmatprep.subr.mxu0 0.0
        %1339 = vmatpush1.msra.mxu0 %v466
        %1340 = vmatprep.subr.mxu0 0.0
        %1341 = vmatpush1.msra.mxu0 %v465
        %1342 = vmatprep.subr.mxu0 0.0
        %1343 = vmatpush1.msra.mxu0 %v464
        %1344 = vmatprep.subr.mxu0 0.0
        %1345 = vmatpush2.msra.mxu0 %v495
        %1346 = vmatprep.subr.mxu0 0.0
        %1347 = vmatpush2.msra.mxu0 %v494
        %1348 = vmatprep.subr.mxu0 0.0
        %1349 = vmatpush2.msra.mxu0 %v493
        %1350 = vmatprep.subr.mxu0 0.0
        %1351 = vmatpush2.msra.mxu0 %v492
        %1352 = vmatprep.subr.mxu0 0.0
        %1353 = vmatpush2.msra.mxu0 %v491
        %1354 = vmatprep.subr.mxu0 0.0
        %1355 = vmatpush2.msra.mxu0 %v490
        %1356 = vmatprep.subr.mxu0 0.0
        %1357 = vmatpush2.msra.mxu0 %v489
        %1358 = vmatprep.subr.mxu0 0.0
        %1359 = vmatpush2.msra.mxu0 %v488
        %1360 = vmatprep.subr.mxu0 0.0
        %1361 = vmatpush2.msra.mxu0 %v487
        %1362 = vmatprep.subr.mxu0 0.0
        %1363 = vmatpush2.msra.mxu0 %v486
        %1364 = vmatprep.subr.mxu0 0.0
        %1365 = vmatpush2.msra.mxu0 %v485
        %1366 = vmatprep.subr.mxu0 0.0
        %1367 = vmatpush2.msra.mxu0 %v484
        %1368 = vmatprep.subr.mxu0 0.0
        %1369 = vmatpush2.msra.mxu0 %v483
        %1370 = vmatprep.subr.mxu0 0.0
        %1371 = vmatpush2.msra.mxu0 %v482
        %1372 = vmatprep.subr.mxu0 0.0
        %1373 = vmatpush2.msra.mxu0 %v481
        %1374 = vmatprep.subr.mxu0 0.0
        %1375 = vmatpush2.msra.mxu0 %v480
        %1376 = vmatprep.mubr.f32.mxu0 %v634
        %1377 = vmatmul.mubr.f32.gmra.mxu0 %v633
        %v1378 = vpop.f32.mrf.mxu0
        %v1379 = vadd.f32 0.0, %v1378
        %v1380 = vpop.f32.mrf.mxu0
        %1381 = vmatprep.mubr.f32.mxu0 %v636
        %1382 = vmatmul.mubr.f32.gmra.mxu0 %v635
        %v1383 = vpop.f32.mrf.mxu0
        %v1384 = vadd.f32 0.0, %v1383
        %v1385 = vpop.f32.mrf.mxu0
        %1386 = vmatprep.mubr.f32.mxu0 %v638
        %1387 = vmatmul.mubr.f32.gmra.mxu0 %v637
        %v1388 = vpop.f32.mrf.mxu0
        %v1389 = vadd.f32 0.0, %v1388
        %v1390 = vpop.f32.mrf.mxu0
        %1391 = vmatprep.mubr.f32.mxu0 %v640
        %1392 = vmatmul.mubr.f32.gmra.mxu0 %v639
        %v1393 = vpop.f32.mrf.mxu0
        %v1394 = vadd.f32 0.0, %v1393
        %v1395 = vpop.f32.mrf.mxu0
        %1396 = vmatprep.mubr.f32.mxu0 %v772
        %1397 = vmatmul.mubr.f32.gmra.mxu0 %v771
        %v1398 = vpop.f32.mrf.mxu0
        %v1399 = vadd.f32 0.0, %v1398
        %v1400 = vpop.f32.mrf.mxu0
        %1401 = vmatprep.mubr.f32.mxu0 %v774
        %1402 = vmatmul.mubr.f32.gmra.mxu0 %v773
        %v1403 = vpop.f32.mrf.mxu0
        %v1404 = vadd.f32 0.0, %v1403
        %v1405 = vpop.f32.mrf.mxu0
        %1406 = vmatprep.mubr.f32.mxu0 %v776
        %1407 = vmatmul.mubr.f32.gmra.mxu0 %v775
        %v1408 = vpop.f32.mrf.mxu0
        %v1409 = vadd.f32 0.0, %v1408
        %v1410 = vpop.f32.mrf.mxu0
        %1411 = vmatprep.mubr.f32.mxu0 %v778
        %1412 = vmatmul.mubr.f32.gmra.mxu0 %v777
        %v1413 = vpop.f32.mrf.mxu0
        %v1414 = vadd.f32 0.0, %v1413
        %v1415 = vpop.f32.mrf.mxu0
        %1416 = vmatprep.mubr.f32.mxu0 %v911
        %1417 = vmatmul.mubr.f32.gmra.mxu0 %v910
        %v1418 = vpop.f32.mrf.mxu0
        %v1419 = vadd.f32 0.0, %v1418
        %v1420 = vpop.f32.mrf.mxu0
        %1421 = vmatprep.mubr.f32.mxu0 %v913
        %1422 = vmatmul.mubr.f32.gmra.mxu0 %v912
        %v1423 = vpop.f32.mrf.mxu0
        %v1424 = vadd.f32 0.0, %v1423
        %v1425 = vpop.f32.mrf.mxu0
        %1426 = vmatprep.mubr.f32.mxu0 %v915
        %1427 = vmatmul.mubr.f32.gmra.mxu0 %v914
        %v1428 = vpop.f32.mrf.mxu0
        %v1429 = vadd.f32 0.0, %v1428
        %v1430 = vpop.f32.mrf.mxu0
        %1431 = vmatprep.mubr.f32.mxu0 %v917
        %1432 = vmatmul.mubr.f32.gmra.mxu0 %v916
        %v1433 = vpop.f32.mrf.mxu0
        %v1434 = vadd.f32 0.0, %v1433
        %v1435 = vpop.f32.mrf.mxu0
        %1436 = vmatprep.mubr.f32.mxu0 %v1050
        %1437 = vmatmul.mubr.f32.gmra.mxu0 %v1049
        %v1438 = vpop.f32.mrf.mxu0
        %v1439 = vadd.f32 0.0, %v1438
        %v1440 = vpop.f32.mrf.mxu0
        %1441 = vmatprep.mubr.f32.mxu0 %v1052
        %1442 = vmatmul.mubr.f32.gmra.mxu0 %v1051
        %v1443 = vpop.f32.mrf.mxu0
        %v1444 = vadd.f32 0.0, %v1443
        %v1445 = vpop.f32.mrf.mxu0
        %1446 = vmatprep.mubr.f32.mxu0 %v1054
        %1447 = vmatmul.mubr.f32.gmra.mxu0 %v1053
        %v1448 = vpop.f32.mrf.mxu0
        %v1449 = vadd.f32 0.0, %v1448
        %v1450 = vpop.f32.mrf.mxu0
        %1451 = vmatprep.mubr.f32.mxu0 %v1056
        %1452 = vmatmul.mubr.f32.gmra.mxu0 %v1055
        %v1453 = vpop.f32.mrf.mxu0
        %v1454 = vadd.f32 0.0, %v1453
        %v1455 = vpop.f32.mrf.mxu0
        %1456 = vmatprep.mubr.f32.mxu0 %v1189
        %1457 = vmatmul.mubr.f32.gmra.mxu0 %v1188
        %v1458 = vpop.f32.mrf.mxu0
        %v1459 = vadd.f32 0.0, %v1458
        %v1460 = vpop.f32.mrf.mxu0
        %1461 = vmatprep.mubr.f32.mxu0 %v1191
        %1462 = vmatmul.mubr.f32.gmra.mxu0 %v1190
        %v1463 = vpop.f32.mrf.mxu0
        %v1464 = vadd.f32 0.0, %v1463
        %v1465 = vpop.f32.mrf.mxu0
        %1466 = vmatprep.mubr.f32.mxu0 %v1193
        %1467 = vmatmul.mubr.f32.gmra.mxu0 %v1192
        %v1468 = vpop.f32.mrf.mxu0
        %v1469 = vadd.f32 0.0, %v1468
        %v1470 = vpop.f32.mrf.mxu0
        %1471 = vmatprep.mubr.f32.mxu0 %v1195
        %1472 = vmatmul.mubr.f32.gmra.mxu0 %v1194
        %v1473 = vpop.f32.mrf.mxu0
        %v1474 = vadd.f32 0.0, %v1473
        %v1475 = vpop.f32.mrf.mxu0
        %1476 = vdwg.mxu0
        %v1477 = vlaneseq
        %v1478 = vshrl.u32 %v1477, 7
        %v1479 = vsub.s32 0, %v1478
        %v1480 = vrot.slane %v1311, %v1479
        %v1481 = vmul.f32 %v1379, %v1480
        %v1482 = vmul.f32 %v1384, %v1480
        %v1483 = vmul.f32 %v1389, %v1480
        %v1484 = vmul.f32 %v1394, %v1480
        %v1485 = vmul.f32 %v1399, %v1480
        %v1486 = vmul.f32 %v1404, %v1480
        %v1487 = vmul.f32 %v1409, %v1480
        %v1488 = vmul.f32 %v1414, %v1480
        %v1489 = vmul.f32 %v1419, %v1480
        %v1490 = vmul.f32 %v1424, %v1480
        %v1491 = vmul.f32 %v1429, %v1480
        %v1492 = vmul.f32 %v1434, %v1480
        %v1493 = vmul.f32 %v1439, %v1480
        %v1494 = vmul.f32 %v1444, %v1480
        %v1495 = vmul.f32 %v1449, %v1480
        %v1496 = vmul.f32 %v1454, %v1480
        %v1497 = vmul.f32 %v1459, %v1480
        %v1498 = vmul.f32 %v1464, %v1480
        %v1499 = vmul.f32 %v1469, %v1480
        %v1500 = vmul.f32 %v1474, %v1480
        %v1501 = vld [vmem:[%s9] sm:$0xff]
        %v1502 = vld [vmem:[%s9 + $0x8] sm:$0xff]
        %v1503 = vld [vmem:[%s9 + $0x10] sm:$0xff]
        %v1504 = vld [vmem:[%s9 + $0x18] sm:$0xff]
        %v1505 = vld [vmem:[%s9 + $0x20] sm:$0xff]
        %v1506 = vld [vmem:[%s9 + $0x28] sm:$0xff]
        %v1507 = vld [vmem:[%s9 + $0x30] sm:$0xff]
        %v1508 = vld [vmem:[%s9 + $0x38] sm:$0xff]
        %v1509 = vld [vmem:[%s9 + $0x40] sm:$0xff]
        %v1510 = vld [vmem:[%s9 + $0x48] sm:$0xff]
        %v1511 = vld [vmem:[%s10] sm:$0xff]
        %v1512 = vld [vmem:[%s10 + $0x8] sm:$0xff]
        %v1513 = vld [vmem:[%s10 + $0x10] sm:$0xff]
        %v1514 = vld [vmem:[%s10 + $0x18] sm:$0xff]
        %v1515 = vld [vmem:[%s10 + $0x20] sm:$0xff]
        %v1517 = vsel %vm669, %v1502, 0
        %v1520 = vsel %vm669, %v1504, 0
        %v1523 = vsel %vm669, %v1506, 0
        %v1526 = vsel %vm669, %v1508, 0
        %v1529 = vsel %vm669, %v1510, 0
        %1531 = vmatprep.subr.mxu0 0.0
        %1532 = vmatpush1.msra.mxu0 %v1496
        %1533 = vmatprep.subr.mxu0 0.0
        %1534 = vmatpush1.msra.mxu0 %v1495
        %1535 = vmatprep.subr.mxu0 0.0
        %1536 = vmatpush1.msra.mxu0 %v1494
        %1537 = vmatprep.subr.mxu0 0.0
        %1538 = vmatpush1.msra.mxu0 %v1493
        %1539 = vmatprep.subr.mxu0 0.0
        %1540 = vmatpush1.msra.mxu0 %v1492
        %1541 = vmatprep.subr.mxu0 0.0
        %1542 = vmatpush1.msra.mxu0 %v1491
        %1543 = vmatprep.subr.mxu0 0.0
        %1544 = vmatpush1.msra.mxu0 %v1490
        %1545 = vmatprep.subr.mxu0 0.0
        %1546 = vmatpush1.msra.mxu0 %v1489
        %1547 = vmatprep.subr.mxu0 0.0
        %1548 = vmatpush1.msra.mxu0 %v1488
        %1549 = vmatprep.subr.mxu0 0.0
        %1550 = vmatpush1.msra.mxu0 %v1487
        %1551 = vmatprep.subr.mxu0 0.0
        %1552 = vmatpush1.msra.mxu0 %v1486
        %1553 = vmatprep.subr.mxu0 0.0
        %1554 = vmatpush1.msra.mxu0 %v1485
        %1555 = vmatprep.subr.mxu0 0.0
        %1556 = vmatpush1.msra.mxu0 %v1484
        %1557 = vmatprep.subr.mxu0 0.0
        %1558 = vmatpush1.msra.mxu0 %v1483
        %1559 = vmatprep.subr.mxu0 0.0
        %1560 = vmatpush1.msra.mxu0 %v1482
        %1561 = vmatprep.subr.mxu0 0.0
        %1562 = vmatpush1.msra.mxu0 %v1481
        %1563 = vmatprep.subr.mxu0 0.0
        %1564 = vmatpush2.msra.mxu0 0.0
        %1565 = vmatprep.subr.mxu0 0.0
        %1566 = vmatpush2.msra.mxu0 0.0
        %1567 = vmatprep.subr.mxu0 0.0
        %1568 = vmatpush2.msra.mxu0 0.0
        %1569 = vmatprep.subr.mxu0 0.0
        %1570 = vmatpush2.msra.mxu0 0.0
        %1571 = vmatprep.subr.mxu0 0.0
        %1572 = vmatpush2.msra.mxu0 0.0
        %1573 = vmatprep.subr.mxu0 0.0
        %1574 = vmatpush2.msra.mxu0 0.0
        %1575 = vmatprep.subr.mxu0 0.0
        %1576 = vmatpush2.msra.mxu0 0.0
        %1577 = vmatprep.subr.mxu0 0.0
        %1578 = vmatpush2.msra.mxu0 0.0
        %1579 = vmatprep.subr.mxu0 0.0
        %1580 = vmatpush2.msra.mxu0 0.0
        %1581 = vmatprep.subr.mxu0 0.0
        %1582 = vmatpush2.msra.mxu0 0.0
        %1583 = vmatprep.subr.mxu0 0.0
        %1584 = vmatpush2.msra.mxu0 0.0
        %1585 = vmatprep.subr.mxu0 0.0
        %1586 = vmatpush2.msra.mxu0 0.0
        %1587 = vmatprep.subr.mxu0 0.0
        %1588 = vmatpush2.msra.mxu0 %v1500
        %1589 = vmatprep.subr.mxu0 0.0
        %1590 = vmatpush2.msra.mxu0 %v1499
        %1591 = vmatprep.subr.mxu0 0.0
        %1592 = vmatpush2.msra.mxu0 %v1498
        %1593 = vmatprep.subr.mxu0 0.0
        %1594 = vmatpush2.msra.mxu0 %v1497
        %1595 = vmatprep.mubr.f32.mxu0 %v1517
        %1596 = vmatmul.mubr.f32.gmra.mxu0 %v1501
        %v1597 = vpop.f32.mrf.mxu0
        %v1598 = vadd.f32 %v1511, %v1597
        %v1599 = vpop.f32.mrf.mxu0
        %1600 = vmatprep.mubr.f32.mxu0 %v1520
        %1601 = vmatmul.mubr.f32.gmra.mxu0 %v1503
        %v1602 = vpop.f32.mrf.mxu0
        %v1603 = vadd.f32 %v1512, %v1602
        %v1604 = vpop.f32.mrf.mxu0
        %1605 = vmatprep.mubr.f32.mxu0 %v1523
        %1606 = vmatmul.mubr.f32.gmra.mxu0 %v1505
        %v1607 = vpop.f32.mrf.mxu0
        %v1608 = vadd.f32 %v1513, %v1607
        %v1609 = vpop.f32.mrf.mxu0
        %1610 = vmatprep.mubr.f32.mxu0 %v1526
        %1611 = vmatmul.mubr.f32.gmra.mxu0 %v1507
        %v1612 = vpop.f32.mrf.mxu0
        %v1613 = vadd.f32 %v1514, %v1612
        %v1614 = vpop.f32.mrf.mxu0
        %1615 = vmatprep.mubr.f32.mxu0 %v1529
        %1616 = vmatmul.mubr.f32.gmra.mxu0 %v1509
        %v1617 = vpop.f32.mrf.mxu0
        %v1618 = vadd.f32 %v1515, %v1617
        %v1619 = vpop.f32.mrf.mxu0
        %1620 = vdwg.mxu0
        %vm1621 = vcmask 7168
        %1622 = vst.msk [vmem:[%s461] sm:$0xff] %vm1621, %v1598
        %1623 = vst.msk [vmem:[%s461 + $0x8] sm:$0xff] %vm1621, %v1603
        %1624 = vst.msk [vmem:[%s461 + $0x10] sm:$0xff] %vm1621, %v1608
        %1625 = vst.msk [vmem:[%s461 + $0x18] sm:$0xff] %vm1621, %v1613
        %1626 = vst.msk [vmem:[%s461 + $0x20] sm:$0xff] %vm1621, %v1618
        %s1627 = sand.u32 %s281, 1
        %s1628 = scalar_lea.sflag [#allocation3], %s1627
        %s1629 = sand.u32 %s281, 1
        %s1630 = smul.addr %s1629, 8
        %s1631 = scalar_lea.vmem [#allocation2], %s1630
        %p1632 = scmp.lt.s32.totalorder %s27, 1
        %s1633 = scalar_select %p1632, %s27, 1
        %s1634 = smul.addr %s1633, 5
        %s1635 = smul.addr %s1634, 8
        %s1636 = scalar_lea.vmem %s12, %s1635
        // Predicated region
        $region65: #{tpu_custom_call.1} parent=63 // pred_check
          %p1637 = pneg %p291
        $region66: #{tpu_custom_call.1} parent=63 // pred_check_branch
          %1639 = sbr.rel (%p1637) target = $region68
        $region67: #{tpu_custom_call.1} parent=63 // pred_region
          %s1641 = ssub.s32 128, 128
          %1642 = vsyncadd %s1628, %s1641
          %s1643 = smul.addr %s27, 2
          %s1644 = smul.addr %s1643, 64
          %s1645 = scalar_lea.hbm %s11, %s1644
          %s1647 = sshll.u32 %s1631, 4
          %s1648 = int_to_ptr.vmem [resolvable:$true] %s1647
          %1650 = dma.vmem_to_hbm [thread:$0]  %s1648, 128, %s1645, %s1628
        $region68: #{tpu_custom_call.1} parent=63 // pred_fallthru
          _
        // Predicated region
        $region69: #{tpu_custom_call.1} parent=63 // pred_check
          %p1651 = pneg %p317
        $region70: #{tpu_custom_call.1} parent=63 // pred_check_branch
          %1653 = sbr.rel (%p1651) target = $region72
        $region71: #{tpu_custom_call.1} parent=63 // pred_region
          _
        $region72: #{tpu_custom_call.1} parent=63 // pred_fallthru
          _
      $region64: #{tpu_custom_call.1} parent=5 // pred_fallthru
        _
      %p1654 = scmp.le.s32.totalorder 2, %s22
      // Predicated region
      $region73: #{tpu_custom_call.1} parent=5 // pred_check
        %p1655 = pneg %p1654
      $region74: #{tpu_custom_call.1} parent=5 // pred_check_branch
        %1657 = sbr.rel (%p1655) target = $region76
      $region75: #{tpu_custom_call.1} parent=5 // pred_region
        %s1658 = ssub.s32 %s22, 2
        // Predicated region
        $region77: #{tpu_custom_call.1} parent=75 // pred_check
          %p1659 = pneg %p297
        $region78: #{tpu_custom_call.1} parent=75 // pred_check_branch
          %1661 = sbr.rel (%p1659) target = $region80
        $region79: #{tpu_custom_call.1} parent=75 // pred_region
          %s1662 = sand.u32 %s282, 1
          %s1663 = scalar_lea.sflag [#allocation3], %s1662
          %s1664 = sand.u32 %s282, 1
          %s1665 = smul.addr %s1664, 8
          %s1666 = scalar_lea.vmem [#allocation2], %s1665
          %1667 = dma.done %s1663, 128
        $region80: #{tpu_custom_call.1} parent=75 // pred_fallthru
          _
        // Predicated region
        $region81: #{tpu_custom_call.1} parent=75 // pred_check
          %p1668 = pneg %p323
        $region82: #{tpu_custom_call.1} parent=75 // pred_check_branch
          %1670 = sbr.rel (%p1668) target = $region84
        $region83: #{tpu_custom_call.1} parent=75 // pred_region
          %p1671 = scmp.lt.s32.totalorder %s28, 1
          %s1672 = scalar_select %p1671, %s28, 1
          %s1673 = smul.addr %s1672, 5
          %s1674 = smul.addr %s1673, 8
          %s1675 = scalar_lea.vmem %s12, %s1674
        $region84: #{tpu_custom_call.1} parent=75 // pred_fallthru
          _
      $region76: #{tpu_custom_call.1} parent=5 // pred_fallthru
        _
    $region6: #{tpu_custom_call.1} parent=1 // loop_footer
      %s26 = sadd.s32 1, %s22
    $region7: #{tpu_custom_call.1} parent=1 // loop_footer_branch
      %21 = sbr.rel target = $region3
    $region8: #{tpu_custom_call.1} parent=1 // loop_exit
      _
    %1676 = vsyncpa [#allocation3], 1
    %s1677 = scalar_lea.sflag [#allocation3], 1
    %1678 = vsyncpa %s1677, 1

</llo_original>
